<compile_context>
chip_gen: v6e
topology: v6e:2x2x1
jax: 0.10.0
libtpu: 0.0.40
codegen_flags: <defaults>
</compile_context>

<pallas_src>
import jax
import jax.numpy as jnp
from jax.experimental import pallas as pl
from jax.experimental.pallas import tpu as pltpu

HIDDEN = 1000        # logical hidden width from the module
HIDDEN_PAD = 1024    # padded to a multiple of 128 lanes


def _round_up(n, m):
    return ((n + m - 1) // m) * m


def mlp_kernel(x_ref, w1_ref, b1_ref, w2q_ref, w2s_ref, b2_ref, w3_ref, b3_ref, o_ref):
    # Layer 1: relu(x @ W1 + b1), f32 accumulation on the MXU.
    x_bf = x_ref[...].astype(jnp.bfloat16)
    h1 = jnp.dot(x_bf, w1_ref[...], preferred_element_type=jnp.float32)
    h1 = jnp.maximum(h1 + b1_ref[...], 0.0)

    # Layer 2: W2 stored as int8 (halves the dominant HBM traffic).  int8 -> bf16 is an
    # exact VPU convert (|q| <= 127 << bf16's 256 exact-integer range); the per-column
    # scale commutes with the matmul, so it is applied to the (TILE_B, H) result.
    w2_bf = w2q_ref[...].astype(jnp.bfloat16)
    h2 = jnp.dot(h1.astype(jnp.bfloat16), w2_bf, preferred_element_type=jnp.float32)
    h2 = h2 * w2s_ref[...]
    h2 = jnp.maximum(h2 + b2_ref[...], 0.0)

    # Layer 3 + bias epilogue: final (TILE_B, out) f32 written directly.
    out = jnp.dot(h2.astype(jnp.bfloat16), w3_ref[...], preferred_element_type=jnp.float32)
    o_ref[...] = out + b3_ref[...]


def mlp_forward(x, w1, b1, w2q, w2s, b2, w3, b3, *, tile_b=256):
    """Fused MLP forward.

    x:   (B, input_size) f32
    w1:  (input_size, HIDDEN_PAD) bf16        b1: (1, HIDDEN_PAD) f32
    w2q: (HIDDEN_PAD, HIDDEN_PAD) int8        w2s: (1, HIDDEN_PAD) f32 per-column scale
    b2:  (1, HIDDEN_PAD) f32
    w3:  (HIDDEN_PAD, output_size) bf16       b3: (1, output_size) f32
    Returns (B, output_size) f32.
    """
    B, in_size = x.shape
    out_size = w3.shape[1]

    # Batch tiling: multiple of 8 f32 sublanes, capped at 256 MXU rows.
    tile_b = min(tile_b, _round_up(B, 8))
    b_pad = _round_up(B, tile_b)
    if b_pad != B:
        x = jnp.zeros((b_pad, in_size), x.dtype).at[:B].set(x)

    grid = (b_pad // tile_b,)
    fixed = lambda shape: pl.BlockSpec(shape, lambda i: (0, 0))  # resident across batch tiles

    cost = pl.CostEstimate(
        flops=2 * b_pad * (in_size * HIDDEN_PAD
                           + HIDDEN_PAD * HIDDEN_PAD
                           + HIDDEN_PAD * out_size),
        transcendentals=0,
        bytes_accessed=(x.size * 4
                        + w1.size * 2 + b1.size * 4
                        + w2q.size * 1 + w2s.size * 4 + b2.size * 4
                        + w3.size * 2 + b3.size * 4
                        + b_pad * out_size * 4),
    )

    out = pl.pallas_call(
        mlp_kernel,
        out_shape=jax.ShapeDtypeStruct((b_pad, out_size), jnp.float32),
        grid=grid,
        in_specs=[
            pl.BlockSpec((tile_b, in_size), lambda i: (i, 0)),   # x tile
            fixed(w1.shape),                                     # W1  (in, Hp)      bf16
            fixed(b1.shape),                                     # b1  (1, Hp)       f32
            fixed(w2q.shape),                                    # W2  (Hp, Hp)      int8
            fixed(w2s.shape),                                    # W2 scales (1, Hp) f32
            fixed(b2.shape),                                     # b2  (1, Hp)       f32
            fixed(w3.shape),                                     # W3  (Hp, out)     bf16
            fixed(b3.shape),                                     # b3  (1, out)      f32
        ],
        out_specs=pl.BlockSpec((tile_b, out_size), lambda i: (i, 0)),
        compiler_params=pltpu.CompilerParams(
            dimension_semantics=("parallel",),
        ),
        cost_estimate=cost,
    )(x, w1, b1, w2q, w2s, b2, w3, b3)

    return out[:B]


def init_linear_params(key, fan_in, fan_out, fan_in_pad, fan_out_pad):
    """Deterministic init mimicking torch.nn.Linear (uniform +/- 1/sqrt(fan_in)).

    Returns zero-padded (f32 W, f32 b).  Padding regions are exact zeros, which is what
    makes the padded network compute the same function (ReLU(0) = 0).
    """
    kw, kb = jax.random.split(key)
    bound = 1.0 / jnp.sqrt(jnp.float32(fan_in))
    w = jax.random.uniform(kw, (fan_in, fan_out), jnp.float32, -bound, bound)
    b = jax.random.uniform(kb, (1, fan_out), jnp.float32, -bound, bound)
    w_pad = jnp.zeros((fan_in_pad, fan_out_pad), jnp.float32).at[:fan_in, :fan_out].set(w)
    b_pad = jnp.zeros((1, fan_out_pad), jnp.float32).at[:, :fan_out].set(b)
    # Load-bearing invariant: padded bias slots must stay exactly zero.
    assert bool(jnp.all(b_pad[:, fan_out:] == 0.0)), "padded bias slots must be zero"
    assert bool(jnp.all(w_pad[fan_in:, :] == 0.0)) and bool(jnp.all(w_pad[:, fan_out:] == 0.0))
    return w_pad, b_pad


def quantize_weight_per_column(w):
    """Symmetric weight-only int8 quantization with a per-output-column f32 scale."""
    absmax = jnp.max(jnp.abs(w), axis=0, keepdims=True)                 # (1, out)
    scale = jnp.where(absmax > 0.0, absmax / 127.0, 1.0).astype(jnp.float32)
    q = jnp.clip(jnp.round(w / scale), -127.0, 127.0).astype(jnp.int8)
    return q, scale


def mlp_reference(x, w1, b1, w2, b2, w3, b3):
    h1 = jnp.maximum(x @ w1 + b1, 0.0)
    h2 = jnp.maximum(h1 @ w2 + b2, 0.0)
    return h2 @ w3 + b3


if __name__ == "__main__":
    key = jax.random.PRNGKey(0)
    k_x, k1, k2, k3 = jax.random.split(key, 4)

    batch = 8
    input_size = 32
    output_size = 16

    x = jax.random.normal(k_x, (batch, input_size), jnp.float32)

    w1p, b1p = init_linear_params(k1, input_size, HIDDEN, input_size, HIDDEN_PAD)
    w2p, b2p = init_linear_params(k2, HIDDEN, HIDDEN, HIDDEN_PAD, HIDDEN_PAD)
    w3p, b3p = init_linear_params(k3, HIDDEN, output_size, HIDDEN_PAD, output_size)

    # Kernel-side weight formats: bf16 for the small W1/W3, weight-only int8 for W2.
    w1_bf = w1p.astype(jnp.bfloat16)
    w3_bf = w3p.astype(jnp.bfloat16)
    w2q, w2s = quantize_weight_per_column(w2p)

    out = mlp_forward(x, w1_bf, b1p, w2q, w2s, b2p, w3_bf, b3p)
    out = jax.block_until_ready(out)

    # Reference uses the kernel's *effective* weight values (bf16-rounded W1/W3 and the
    # dequantized int8 W2) but keeps activations in f32; tolerances cover the kernel's
    # bf16 activation rounding at the MXU inputs.
    w2_deq = w2q.astype(jnp.float32) * w2s
    ref = mlp_reference(
        x,
        w1_bf.astype(jnp.float32), b1p,
        w2_deq, b2p,
        w3_bf.astype(jnp.float32), b3p,
    )

    assert out.shape == (batch, output_size)
    assert out.dtype == jnp.float32
    assert jnp.allclose(out, ref, atol=2e-2, rtol=2e-2), "Pallas output mismatch vs reference"

    print("KERNEL_OK")
</pallas_src>

<mosaic_0001>
module attributes {stable_mosaic.version = 11 : i64} {
  func.func @mlp_kernel(%arg0: i32, %arg1: memref<8x32xf32, #tpu.memory_space<vmem>>, %arg2: memref<32x1024xbf16, #tpu.memory_space<vmem>>, %arg3: memref<1x1024xf32, #tpu.memory_space<vmem>>, %arg4: memref<1024x1024xi8, #tpu.memory_space<vmem>>, %arg5: memref<1x1024xf32, #tpu.memory_space<vmem>>, %arg6: memref<1x1024xf32, #tpu.memory_space<vmem>>, %arg7: memref<1024x16xbf16, #tpu.memory_space<vmem>>, %arg8: memref<1x16xf32, #tpu.memory_space<vmem>>, %arg9: memref<8x16xf32, #tpu.memory_space<vmem>>) attributes {dimension_semantics = [#tpu.dimension_semantics<parallel>], iteration_bounds = array<i64: 1>, scalar_prefetch = 0 : i64, scratch_operands = 0 : i64, tpu.core_type = #tpu.core_type<tc>, window_params = [{transform_indices = @transform_0, window_bounds = array<i64: 8, 32>}, {pipeline_mode = #tpu.pipeline_mode<synchronous>, transform_indices = @transform_1, window_bounds = array<i64: 32, 1024>}, {pipeline_mode = #tpu.pipeline_mode<synchronous>, transform_indices = @transform_2, window_bounds = array<i64: 1, 1024>}, {pipeline_mode = #tpu.pipeline_mode<synchronous>, transform_indices = @transform_3, window_bounds = array<i64: 1024, 1024>}, {pipeline_mode = #tpu.pipeline_mode<synchronous>, transform_indices = @transform_4, window_bounds = array<i64: 1, 1024>}, {pipeline_mode = #tpu.pipeline_mode<synchronous>, transform_indices = @transform_5, window_bounds = array<i64: 1, 1024>}, {pipeline_mode = #tpu.pipeline_mode<synchronous>, transform_indices = @transform_6, window_bounds = array<i64: 1024, 16>}, {pipeline_mode = #tpu.pipeline_mode<synchronous>, transform_indices = @transform_7, window_bounds = array<i64: 1, 16>}, {transform_indices = @transform_8, window_bounds = array<i64: 8, 16>}]} {
    %c0 = arith.constant 0 : index
    %c0_0 = arith.constant 0 : index
    %0 = vector.load %arg1[%c0, %c0_0] : memref<8x32xf32, #tpu.memory_space<vmem>>, vector<8x32xf32>
    %1 = arith.truncf %0 : vector<8x32xf32> to vector<8x32xbf16>
    %c0_1 = arith.constant 0 : index
    %c0_2 = arith.constant 0 : index
    %2 = vector.load %arg2[%c0_1, %c0_2] : memref<32x1024xbf16, #tpu.memory_space<vmem>>, vector<32x1024xbf16>
    %cst = arith.constant dense<0.000000e+00> : vector<8x1024xf32>
    %3 = tpu.matmul %1, %2, %cst {dimension_numbers = #tpu.dot_dimension_numbers<[1], [0], [0], [1], [0, 0, 1, 1], [], []>} : vector<8x32xbf16>, vector<32x1024xbf16>, vector<8x1024xf32> -> vector<8x1024xf32>
    %c0_3 = arith.constant 0 : index
    %c0_4 = arith.constant 0 : index
    %4 = vector.load %arg3[%c0_3, %c0_4] : memref<1x1024xf32, #tpu.memory_space<vmem>>, vector<1x1024xf32>
    %5 = vector.broadcast %4 : vector<1x1024xf32> to vector<8x1024xf32>
    %6 = arith.addf %3, %5 : vector<8x1024xf32>
    %cst_5 = arith.constant 0.000000e+00 : f32
    %7 = vector.broadcast %cst_5 : f32 to vector<8x1024xf32>
    %8 = arith.maximumf %6, %7 : vector<8x1024xf32>
    %c0_6 = arith.constant 0 : index
    %c0_7 = arith.constant 0 : index
    %9 = vector.load %arg4[%c0_6, %c0_7] : memref<1024x1024xi8, #tpu.memory_space<vmem>>, vector<1024x1024xi8>
    %10 = arith.sitofp %9 : vector<1024x1024xi8> to vector<1024x1024xbf16>
    %11 = arith.truncf %8 : vector<8x1024xf32> to vector<8x1024xbf16>
    %cst_8 = arith.constant dense<0.000000e+00> : vector<8x1024xf32>
    %12 = tpu.matmul %11, %10, %cst_8 {dimension_numbers = #tpu.dot_dimension_numbers<[1], [0], [0], [1], [0, 0, 1, 1], [], []>} : vector<8x1024xbf16>, vector<1024x1024xbf16>, vector<8x1024xf32> -> vector<8x1024xf32>
    %c0_9 = arith.constant 0 : index
    %c0_10 = arith.constant 0 : index
    %13 = vector.load %arg5[%c0_9, %c0_10] : memref<1x1024xf32, #tpu.memory_space<vmem>>, vector<1x1024xf32>
    %14 = vector.broadcast %13 : vector<1x1024xf32> to vector<8x1024xf32>
    %15 = arith.mulf %12, %14 : vector<8x1024xf32>
    %c0_11 = arith.constant 0 : index
    %c0_12 = arith.constant 0 : index
    %16 = vector.load %arg6[%c0_11, %c0_12] : memref<1x1024xf32, #tpu.memory_space<vmem>>, vector<1x1024xf32>
    %17 = vector.broadcast %16 : vector<1x1024xf32> to vector<8x1024xf32>
    %18 = arith.addf %15, %17 : vector<8x1024xf32>
    %cst_13 = arith.constant 0.000000e+00 : f32
    %19 = vector.broadcast %cst_13 : f32 to vector<8x1024xf32>
    %20 = arith.maximumf %18, %19 : vector<8x1024xf32>
    %21 = arith.truncf %20 : vector<8x1024xf32> to vector<8x1024xbf16>
    %c0_14 = arith.constant 0 : index
    %c0_15 = arith.constant 0 : index
    %22 = vector.load %arg7[%c0_14, %c0_15] : memref<1024x16xbf16, #tpu.memory_space<vmem>>, vector<1024x16xbf16>
    %cst_16 = arith.constant dense<0.000000e+00> : vector<8x16xf32>
    %23 = tpu.matmul %21, %22, %cst_16 {dimension_numbers = #tpu.dot_dimension_numbers<[1], [0], [0], [1], [0, 0, 1, 1], [], []>} : vector<8x1024xbf16>, vector<1024x16xbf16>, vector<8x16xf32> -> vector<8x16xf32>
    %c0_17 = arith.constant 0 : index
    %c0_18 = arith.constant 0 : index
    %24 = vector.load %arg8[%c0_17, %c0_18] : memref<1x16xf32, #tpu.memory_space<vmem>>, vector<1x16xf32>
    %25 = vector.broadcast %24 : vector<1x16xf32> to vector<8x16xf32>
    %26 = arith.addf %23, %25 : vector<8x16xf32>
    %c0_19 = arith.constant 0 : index
    %c0_20 = arith.constant 0 : index
    %27 = vector.load %arg9[%c0_19, %c0_20] : memref<8x16xf32, #tpu.memory_space<vmem>>, vector<8x16xf32>
    tpu.vector_store %arg9[%c0_19, %c0_20], %26 {strides = array<i32>} : memref<8x16xf32, #tpu.memory_space<vmem>>, vector<8x16xf32>,
    return
  }
  func.func @transform_0(%arg0: i32) -> (i32, i32) {
    %c0_i32 = arith.constant 0 : i32
    %c0_i32_0 = arith.constant 0 : i32
    return %arg0, %c0_i32 : i32, i32
  }
  func.func @transform_1(%arg0: i32) -> (i32, i32) {
    %c0_i32 = arith.constant 0 : i32
    %c0_i32_0 = arith.constant 0 : i32
    %c0_i32_1 = arith.constant 0 : i32
    return %c0_i32, %c0_i32_0 : i32, i32
  }
  func.func @transform_2(%arg0: i32) -> (i32, i32) {
    %c0_i32 = arith.constant 0 : i32
    %c0_i32_0 = arith.constant 0 : i32
    %c0_i32_1 = arith.constant 0 : i32
    return %c0_i32, %c0_i32_0 : i32, i32
  }
  func.func @transform_3(%arg0: i32) -> (i32, i32) {
    %c0_i32 = arith.constant 0 : i32
    %c0_i32_0 = arith.constant 0 : i32
    %c0_i32_1 = arith.constant 0 : i32
    return %c0_i32, %c0_i32_0 : i32, i32
  }
  func.func @transform_4(%arg0: i32) -> (i32, i32) {
    %c0_i32 = arith.constant 0 : i32
    %c0_i32_0 = arith.constant 0 : i32
    %c0_i32_1 = arith.constant 0 : i32
    return %c0_i32, %c0_i32_0 : i32, i32
  }
  func.func @transform_5(%arg0: i32) -> (i32, i32) {
    %c0_i32 = arith.constant 0 : i32
    %c0_i32_0 = arith.constant 0 : i32
    %c0_i32_1 = arith.constant 0 : i32
    return %c0_i32, %c0_i32_0 : i32, i32
  }
  func.func @transform_6(%arg0: i32) -> (i32, i32) {
    %c0_i32 = arith.constant 0 : i32
    %c0_i32_0 = arith.constant 0 : i32
    %c0_i32_1 = arith.constant 0 : i32
    return %c0_i32, %c0_i32_0 : i32, i32
  }
  func.func @transform_7(%arg0: i32) -> (i32, i32) {
    %c0_i32 = arith.constant 0 : i32
    %c0_i32_0 = arith.constant 0 : i32
    %c0_i32_1 = arith.constant 0 : i32
    return %c0_i32, %c0_i32_0 : i32, i32
  }
  func.func @transform_8(%arg0: i32) -> (i32, i32) {
    %c0_i32 = arith.constant 0 : i32
    %c0_i32_0 = arith.constant 0 : i32
    return %arg0, %c0_i32 : i32, i32
  }
}

</mosaic_0001>

<llo_original>
// kernel: tpu_custom_call.1
$region0: #{tpu_custom_call.1}
  #allocation0 [shape = 'u32[]', space=smem, size = 0x4, offset = 0x4, fixed_abs, tag = 'smem constant byte address 0x4 - core index']
  #allocation1 [shape = 'u32[144,128]{1,0:T(1,128)}', space=vmem, size = 0x12000, scoped, tag = 'internal scratch']
  %s0 = inlined_call_operand.vmem [shape: f32[8,32], index: 0, kind: input, shape index: {}]
  %s1 = inlined_call_operand.vmem [shape: bf16[32,1024], index: 1, kind: input, shape index: {}]
  %s2 = inlined_call_operand.vmem [shape: f32[1,1024], index: 2, kind: input, shape index: {}]
  %s3 = inlined_call_operand.hbm [shape: s8[1024,1024], index: 3, kind: input, shape index: {}]
  %s4 = inlined_call_operand.vmem [shape: f32[1,1024], index: 4, kind: input, shape index: {}]
  %s5 = inlined_call_operand.vmem [shape: f32[1,1024], index: 5, kind: input, shape index: {}]
  %s6 = inlined_call_operand.vmem [shape: bf16[1024,16], index: 6, kind: input, shape index: {}]
  %s7 = inlined_call_operand.vmem [shape: f32[1,16], index: 7, kind: input, shape index: {}]
  %s8 = inlined_call_operand.hbm [shape: f32[8,16], index: 8, kind: output, shape index: {}]
  %s9 = sld [smem:[#allocation0]]
  $region46: #{tpu_custom_call.1} parent=0
    _
  %s11 = ssub.s32 1, %s9
  %s12 = scalar_select 0, %s11, %s9
  $region1: #{tpu_custom_call.1} parent=0
    #allocation2 [shape = 'u8[1048576]{0}', space=vmem, size = 0x100000, scoped, tag = 'input window, operand 3, single buffered']
    #allocation3 [shape = 's32[1]{0}', space=sflag, size = 0x4, scoped, tag = 'scoped memory for tpu_custom_call.1']
    #allocation4 [shape = 's32[1]{0}', space=sflag, size = 0x4, scoped, tag = 'scoped memory for tpu_custom_call.1']
    #allocation5 [shape = 'u8[4096]{0}', space=vmem, size = 0x1000, scoped, tag = 'output window, operand 0, single buffered']
    %13 = vsyncpa [#allocation3], 0
    %14 = vsyncpa [#allocation4], 0
    // Predicated region
    $region2: #{tpu_custom_call.1} parent=1 // pred_check
      _
    $region3: #{tpu_custom_call.1} parent=1 // pred_check_branch
      %16 = sbr.rel (0) target = $region5
    $region4: #{tpu_custom_call.1} parent=1 // pred_region
      _
    $region5: #{tpu_custom_call.1} parent=1 // pred_fallthru
      _
    // Predicated region
    $region6: #{tpu_custom_call.1} parent=1 // pred_check
      _
    $region7: #{tpu_custom_call.1} parent=1 // pred_check_branch
      %18 = sbr.rel (0) target = $region9
    $region8: #{tpu_custom_call.1} parent=1 // pred_region
      _
    $region9: #{tpu_custom_call.1} parent=1 // pred_fallthru
      _
    // Predicated region
    $region10: #{tpu_custom_call.1} parent=1 // pred_check
      _
    $region11: #{tpu_custom_call.1} parent=1 // pred_check_branch
      %20 = sbr.rel (0) target = $region13
    $region12: #{tpu_custom_call.1} parent=1 // pred_region
      _
    $region13: #{tpu_custom_call.1} parent=1 // pred_fallthru
      _
    // Predicated region
    $region14: #{tpu_custom_call.1} parent=1 // pred_check
      _
    $region15: #{tpu_custom_call.1} parent=1 // pred_check_branch
      %22 = sbr.rel (0) target = $region17
    $region16: #{tpu_custom_call.1} parent=1 // pred_region
      %s24 = ssub.s32 32768, 32768
      %25 = vsyncadd [#allocation3], %s24
      %s26 = sshll.u32 [#allocation2], 4
      %s27 = int_to_ptr.vmem [resolvable:$true] %s26
      %32 = dma.hbm_to_vmem [thread:$0]  %s3, 32768, %s27, [#allocation3], 1024, 1024, 64
    $region17: #{tpu_custom_call.1} parent=1 // pred_fallthru
      _
    // Predicated region
    $region18: #{tpu_custom_call.1} parent=1 // pred_check
      _
    $region19: #{tpu_custom_call.1} parent=1 // pred_check_branch
      %34 = sbr.rel (0) target = $region21
    $region20: #{tpu_custom_call.1} parent=1 // pred_region
      _
    $region21: #{tpu_custom_call.1} parent=1 // pred_fallthru
      _
    // Predicated region
    $region22: #{tpu_custom_call.1} parent=1 // pred_check
      _
    $region23: #{tpu_custom_call.1} parent=1 // pred_check_branch
      %36 = sbr.rel (0) target = $region25
    $region24: #{tpu_custom_call.1} parent=1 // pred_region
      _
    $region25: #{tpu_custom_call.1} parent=1 // pred_fallthru
      _
    // Predicated region
    $region26: #{tpu_custom_call.1} parent=1 // pred_check
      _
    $region27: #{tpu_custom_call.1} parent=1 // pred_check_branch
      %38 = sbr.rel (0) target = $region29
    $region28: #{tpu_custom_call.1} parent=1 // pred_region
      _
    $region29: #{tpu_custom_call.1} parent=1 // pred_fallthru
      _
    // Predicated region
    $region30: #{tpu_custom_call.1} parent=1 // pred_check
      _
    $region31: #{tpu_custom_call.1} parent=1 // pred_check_branch
      %40 = sbr.rel (0) target = $region33
    $region32: #{tpu_custom_call.1} parent=1 // pred_region
      _
    $region33: #{tpu_custom_call.1} parent=1 // pred_fallthru
      _
    // Predicated region
    $region34: #{tpu_custom_call.1} parent=1 // pred_check
      _
    $region35: #{tpu_custom_call.1} parent=1 // pred_check_branch
      %42 = sbr.rel (0) target = $region37
    $region36: #{tpu_custom_call.1} parent=1 // pred_region
      %43 = dma.done [#allocation3], 32768
    $region37: #{tpu_custom_call.1} parent=1 // pred_fallthru
      _
    %v45 = vld [vmem:[%s0] sm:$0xff]
    %v46 = vpack.c.bf16 %v45, %v45
    %v47 = vld [vmem:[%s1] sm:$0xff]
    %v48 = vld [vmem:[%s1 + $0x8] sm:$0xff]
    %v49 = vld [vmem:[%s1 + $0x10] sm:$0xff]
    %v50 = vld [vmem:[%s1 + $0x18] sm:$0xff]
    %v51 = vld [vmem:[%s1 + $0x20] sm:$0xff]
    %v52 = vld [vmem:[%s1 + $0x28] sm:$0xff]
    %v53 = vld [vmem:[%s1 + $0x30] sm:$0xff]
    %v54 = vld [vmem:[%s1 + $0x38] sm:$0xff]
    %v55 = vld [vmem:[%s1 + $0x40] sm:$0xff]
    %v56 = vld [vmem:[%s1 + $0x48] sm:$0xff]
    %v57 = vld [vmem:[%s1 + $0x50] sm:$0xff]
    %v58 = vld [vmem:[%s1 + $0x58] sm:$0xff]
    %v59 = vld [vmem:[%s1 + $0x60] sm:$0xff]
    %v60 = vld [vmem:[%s1 + $0x68] sm:$0xff]
    %v61 = vld [vmem:[%s1 + $0x70] sm:$0xff]
    %v62 = vld [vmem:[%s1 + $0x78] sm:$0xff]
    %v63 = vld [vmem:[%s2] sm:$0xff]
    %v65 = vlaneseq
    %v66 = vshrl.u32 %v65, 7
    %v67 = vsub.s32 0, %v66
    %v68 = vrot.slane %v63, %v67
    %v69 = vlaneseq
    %v70 = vshrl.u32 %v69, 7
    %v71 = vsub.s32 1, %v70
    %v72 = vrot.slane %v63, %v71
    %v73 = vlaneseq
    %v74 = vshrl.u32 %v73, 7
    %v75 = vsub.s32 2, %v74
    %v76 = vrot.slane %v63, %v75
    %v77 = vlaneseq
    %v78 = vshrl.u32 %v77, 7
    %v79 = vsub.s32 3, %v78
    %v80 = vrot.slane %v63, %v79
    %v81 = vlaneseq
    %v82 = vshrl.u32 %v81, 7
    %v83 = vsub.s32 4, %v82
    %v84 = vrot.slane %v63, %v83
    %v85 = vlaneseq
    %v86 = vshrl.u32 %v85, 7
    %v87 = vsub.s32 5, %v86
    %v88 = vrot.slane %v63, %v87
    %v89 = vlaneseq
    %v90 = vshrl.u32 %v89, 7
    %v91 = vsub.s32 6, %v90
    %v92 = vrot.slane %v63, %v91
    %v93 = vlaneseq
    %v94 = vshrl.u32 %v93, 7
    %v95 = vsub.s32 7, %v94
    %v96 = vrot.slane %v63, %v95
    %v121 = vunpack.c.l.b16 %v47
    %v122 = vunpack.c.h.b16 %v47
    %v123 = vunpack.c.l.b16 %v48
    %v124 = vunpack.c.h.b16 %v48
    %v125 = vunpack.c.l.b16 %v49
    %v126 = vunpack.c.h.b16 %v49
    %v127 = vunpack.c.l.b16 %v50
    %v128 = vunpack.c.h.b16 %v50
    %v129 = vunpack.c.l.b16 %v51
    %v130 = vunpack.c.h.b16 %v51
    %v131 = vunpack.c.l.b16 %v52
    %v132 = vunpack.c.h.b16 %v52
    %v133 = vunpack.c.l.b16 %v53
    %v134 = vunpack.c.h.b16 %v53
    %v135 = vunpack.c.l.b16 %v54
    %v136 = vunpack.c.h.b16 %v54
    %v137 = vunpack.c.l.b16 %v55
    %v138 = vunpack.c.h.b16 %v55
    %v139 = vunpack.c.l.b16 %v56
    %v140 = vunpack.c.h.b16 %v56
    %v141 = vunpack.c.l.b16 %v57
    %v142 = vunpack.c.h.b16 %v57
    %v143 = vunpack.c.l.b16 %v58
    %v144 = vunpack.c.h.b16 %v58
    %v145 = vunpack.c.l.b16 %v59
    %v146 = vunpack.c.h.b16 %v59
    %v147 = vunpack.c.l.b16 %v60
    %v148 = vunpack.c.h.b16 %v60
    %v149 = vunpack.c.l.b16 %v61
    %v150 = vunpack.c.h.b16 %v61
    %v151 = vunpack.c.l.b16 %v62
    %v152 = vunpack.c.h.b16 %v62
    %v153 = vpack.c.b16 %v129, %v121
    %v154 = vpack.c.b16 %v130, %v122
    %v155 = vpack.c.b16 %v131, %v123
    %v156 = vpack.c.b16 %v132, %v124
    %v157 = vpack.c.b16 %v133, %v125
    %v158 = vpack.c.b16 %v134, %v126
    %v159 = vpack.c.b16 %v135, %v127
    %v160 = vpack.c.b16 %v136, %v128
    %v161 = vpack.c.b16 %v145, %v137
    %v162 = vpack.c.b16 %v146, %v138
    %v163 = vpack.c.b16 %v147, %v139
    %v164 = vpack.c.b16 %v148, %v140
    %v165 = vpack.c.b16 %v149, %v141
    %v166 = vpack.c.b16 %v150, %v142
    %v167 = vpack.c.b16 %v151, %v143
    %v168 = vpack.c.b16 %v152, %v144
    %vm185 = vcmask 261120
    %v187 = vsel %vm185, %v46, 0
    %189 = vmatprep.subr.bf16.mxu0 0
    %190 = vmatpush1.bf16.msra.mxu0 0
    %191 = vmatprep.subr.bf16.mxu0 0
    %192 = vmatpush1.bf16.msra.mxu0 0
    %193 = vmatprep.subr.bf16.mxu0 0
    %194 = vmatpush1.bf16.msra.mxu0 0
    %195 = vmatprep.subr.bf16.mxu0 0
    %196 = vmatpush1.bf16.msra.mxu0 0
    %197 = vmatprep.subr.bf16.mxu0 0
    %198 = vmatpush1.bf16.msra.mxu0 0
    %199 = vmatprep.subr.bf16.mxu0 0
    %200 = vmatpush1.bf16.msra.mxu0 0
    %201 = vmatprep.subr.bf16.mxu0 %v162
    %202 = vmatpush1.bf16.msra.mxu0 %v161
    %203 = vmatprep.subr.bf16.mxu0 %v154
    %204 = vmatpush1.bf16.msra.mxu0 %v153
    %205 = vmatprep.subr.bf16.mxu0 0
    %206 = vmatpush2.bf16.msra.mxu0 0
    %207 = vmatprep.subr.bf16.mxu0 0
    %208 = vmatpush2.bf16.msra.mxu0 0
    %209 = vmatprep.subr.bf16.mxu0 0
    %210 = vmatpush2.bf16.msra.mxu0 0
    %211 = vmatprep.subr.bf16.mxu0 0
    %212 = vmatpush2.bf16.msra.mxu0 0
    %213 = vmatprep.subr.bf16.mxu0 0
    %214 = vmatpush2.bf16.msra.mxu0 0
    %215 = vmatprep.subr.bf16.mxu0 0
    %216 = vmatpush2.bf16.msra.mxu0 0
    %217 = vmatprep.subr.bf16.mxu0 0
    %218 = vmatpush2.bf16.msra.mxu0 0
    %219 = vmatprep.subr.bf16.mxu0 0
    %220 = vmatpush2.bf16.msra.mxu0 0
    %221 = vmatprep.mubr.bf16.mxu0 0
    %222 = vmatmul.mubr.bf16.gmra.mxu0 %v187
    %v223 = vpop.f32.mrf.mxu0
    %v224 = vadd.f32 %v68, %v223
    %v225 = vpop.f32.mrf.mxu0
    %v226 = vadd.f32 %v72, %v225
    %v227 = vpop.f32.mrf.mxu0
    %v228 = vpop.f32.mrf.mxu0
    %229 = vdwg.mxu0
    %230 = vmatprep.subr.bf16.mxu0 0
    %231 = vmatpush1.bf16.msra.mxu0 0
    %232 = vmatprep.subr.bf16.mxu0 0
    %233 = vmatpush1.bf16.msra.mxu0 0
    %234 = vmatprep.subr.bf16.mxu0 0
    %235 = vmatpush1.bf16.msra.mxu0 0
    %236 = vmatprep.subr.bf16.mxu0 0
    %237 = vmatpush1.bf16.msra.mxu0 0
    %238 = vmatprep.subr.bf16.mxu0 0
    %239 = vmatpush1.bf16.msra.mxu0 0
    %240 = vmatprep.subr.bf16.mxu0 0
    %241 = vmatpush1.bf16.msra.mxu0 0
    %242 = vmatprep.subr.bf16.mxu0 %v164
    %243 = vmatpush1.bf16.msra.mxu0 %v163
    %244 = vmatprep.subr.bf16.mxu0 %v156
    %245 = vmatpush1.bf16.msra.mxu0 %v155
    %246 = vmatprep.subr.bf16.mxu0 0
    %247 = vmatpush2.bf16.msra.mxu0 0
    %248 = vmatprep.subr.bf16.mxu0 0
    %249 = vmatpush2.bf16.msra.mxu0 0
    %250 = vmatprep.subr.bf16.mxu0 0
    %251 = vmatpush2.bf16.msra.mxu0 0
    %252 = vmatprep.subr.bf16.mxu0 0
    %253 = vmatpush2.bf16.msra.mxu0 0
    %254 = vmatprep.subr.bf16.mxu0 0
    %255 = vmatpush2.bf16.msra.mxu0 0
    %256 = vmatprep.subr.bf16.mxu0 0
    %257 = vmatpush2.bf16.msra.mxu0 0
    %258 = vmatprep.subr.bf16.mxu0 0
    %259 = vmatpush2.bf16.msra.mxu0 0
    %260 = vmatprep.subr.bf16.mxu0 0
    %261 = vmatpush2.bf16.msra.mxu0 0
    %262 = vmatprep.mubr.bf16.mxu0 0
    %263 = vmatmul.mubr.bf16.gmra.mxu0 %v187
    %v264 = vpop.f32.mrf.mxu0
    %v265 = vadd.f32 %v76, %v264
    %v266 = vpop.f32.mrf.mxu0
    %v267 = vadd.f32 %v80, %v266
    %v268 = vpop.f32.mrf.mxu0
    %v269 = vpop.f32.mrf.mxu0
    %270 = vdwg.mxu0
    %271 = vmatprep.subr.bf16.mxu0 0
    %272 = vmatpush1.bf16.msra.mxu0 0
    %273 = vmatprep.subr.bf16.mxu0 0
    %274 = vmatpush1.bf16.msra.mxu0 0
    %275 = vmatprep.subr.bf16.mxu0 0
    %276 = vmatpush1.bf16.msra.mxu0 0
    %277 = vmatprep.subr.bf16.mxu0 0
    %278 = vmatpush1.bf16.msra.mxu0 0
    %279 = vmatprep.subr.bf16.mxu0 0
    %280 = vmatpush1.bf16.msra.mxu0 0
    %281 = vmatprep.subr.bf16.mxu0 0
    %282 = vmatpush1.bf16.msra.mxu0 0
    %283 = vmatprep.subr.bf16.mxu0 %v166
    %284 = vmatpush1.bf16.msra.mxu0 %v165
    %285 = vmatprep.subr.bf16.mxu0 %v158
    %286 = vmatpush1.bf16.msra.mxu0 %v157
    %287 = vmatprep.subr.bf16.mxu0 0
    %288 = vmatpush2.bf16.msra.mxu0 0
    %289 = vmatprep.subr.bf16.mxu0 0
    %290 = vmatpush2.bf16.msra.mxu0 0
    %291 = vmatprep.subr.bf16.mxu0 0
    %292 = vmatpush2.bf16.msra.mxu0 0
    %293 = vmatprep.subr.bf16.mxu0 0
    %294 = vmatpush2.bf16.msra.mxu0 0
    %295 = vmatprep.subr.bf16.mxu0 0
    %296 = vmatpush2.bf16.msra.mxu0 0
    %297 = vmatprep.subr.bf16.mxu0 0
    %298 = vmatpush2.bf16.msra.mxu0 0
    %299 = vmatprep.subr.bf16.mxu0 0
    %300 = vmatpush2.bf16.msra.mxu0 0
    %301 = vmatprep.subr.bf16.mxu0 0
    %302 = vmatpush2.bf16.msra.mxu0 0
    %303 = vmatprep.mubr.bf16.mxu0 0
    %304 = vmatmul.mubr.bf16.gmra.mxu0 %v187
    %v305 = vpop.f32.mrf.mxu0
    %v306 = vadd.f32 %v84, %v305
    %v307 = vpop.f32.mrf.mxu0
    %v308 = vadd.f32 %v88, %v307
    %v309 = vpop.f32.mrf.mxu0
    %v310 = vpop.f32.mrf.mxu0
    %311 = vdwg.mxu0
    %312 = vmatprep.subr.bf16.mxu0 0
    %313 = vmatpush1.bf16.msra.mxu0 0
    %314 = vmatprep.subr.bf16.mxu0 0
    %315 = vmatpush1.bf16.msra.mxu0 0
    %316 = vmatprep.subr.bf16.mxu0 0
    %317 = vmatpush1.bf16.msra.mxu0 0
    %318 = vmatprep.subr.bf16.mxu0 0
    %319 = vmatpush1.bf16.msra.mxu0 0
    %320 = vmatprep.subr.bf16.mxu0 0
    %321 = vmatpush1.bf16.msra.mxu0 0
    %322 = vmatprep.subr.bf16.mxu0 0
    %323 = vmatpush1.bf16.msra.mxu0 0
    %324 = vmatprep.subr.bf16.mxu0 %v168
    %325 = vmatpush1.bf16.msra.mxu0 %v167
    %326 = vmatprep.subr.bf16.mxu0 %v160
    %327 = vmatpush1.bf16.msra.mxu0 %v159
    %328 = vmatprep.subr.bf16.mxu0 0
    %329 = vmatpush2.bf16.msra.mxu0 0
    %330 = vmatprep.subr.bf16.mxu0 0
    %331 = vmatpush2.bf16.msra.mxu0 0
    %332 = vmatprep.subr.bf16.mxu0 0
    %333 = vmatpush2.bf16.msra.mxu0 0
    %334 = vmatprep.subr.bf16.mxu0 0
    %335 = vmatpush2.bf16.msra.mxu0 0
    %336 = vmatprep.subr.bf16.mxu0 0
    %337 = vmatpush2.bf16.msra.mxu0 0
    %338 = vmatprep.subr.bf16.mxu0 0
    %339 = vmatpush2.bf16.msra.mxu0 0
    %340 = vmatprep.subr.bf16.mxu0 0
    %341 = vmatpush2.bf16.msra.mxu0 0
    %342 = vmatprep.subr.bf16.mxu0 0
    %343 = vmatpush2.bf16.msra.mxu0 0
    %344 = vmatprep.mubr.bf16.mxu0 0
    %345 = vmatmul.mubr.bf16.gmra.mxu0 %v187
    %v346 = vpop.f32.mrf.mxu0
    %v347 = vadd.f32 %v92, %v346
    %v348 = vpop.f32.mrf.mxu0
    %v349 = vadd.f32 %v96, %v348
    %v350 = vpop.f32.mrf.mxu0
    %v351 = vpop.f32.mrf.mxu0
    %352 = vdwg.mxu0
    %v353 = vmax.f32 %v224, 0.0
    %v354 = vmax.f32 %v226, 0.0
    %v355 = vmax.f32 %v265, 0.0
    %v356 = vmax.f32 %v267, 0.0
    %v357 = vmax.f32 %v306, 0.0
    %v358 = vmax.f32 %v308, 0.0
    %v359 = vmax.f32 %v347, 0.0
    %v360 = vmax.f32 %v349, 0.0
    %v361 = vld [vmem:[#allocation2] sm:$0xff]
    %v362 = vld [vmem:[#allocation2 + $0x8] sm:$0xff]
    %v363 = vld [vmem:[#allocation2 + $0x10] sm:$0xff]
    %v364 = vld [vmem:[#allocation2 + $0x18] sm:$0xff]
    %v365 = vld [vmem:[#allocation2 + $0x20] sm:$0xff]
    %v366 = vld [vmem:[#allocation2 + $0x28] sm:$0xff]
    %v367 = vld [vmem:[#allocation2 + $0x30] sm:$0xff]
    %v368 = vld [vmem:[#allocation2 + $0x38] sm:$0xff]
    %v369 = vld [vmem:[#allocation2 + $0x40] sm:$0xff]
    %v370 = vld [vmem:[#allocation2 + $0x48] sm:$0xff]
    %v371 = vld [vmem:[#allocation2 + $0x50] sm:$0xff]
    %v372 = vld [vmem:[#allocation2 + $0x58] sm:$0xff]
    %v373 = vld [vmem:[#allocation2 + $0x60] sm:$0xff]
    %v374 = vld [vmem:[#allocation2 + $0x68] sm:$0xff]
    %v375 = vld [vmem:[#allocation2 + $0x70] sm:$0xff]
    %v376 = vld [vmem:[#allocation2 + $0x78] sm:$0xff]
    %v377 = vld [vmem:[#allocation2 + $0x80] sm:$0xff]
    %v378 = vld [vmem:[#allocation2 + $0x88] sm:$0xff]
    %v379 = vld [vmem:[#allocation2 + $0x90] sm:$0xff]
    %v380 = vld [vmem:[#allocation2 + $0x98] sm:$0xff]
    %v381 = vld [vmem:[#allocation2 + $0xa0] sm:$0xff]
    %v382 = vld [vmem:[#allocation2 + $0xa8] sm:$0xff]
    %v383 = vld [vmem:[#allocation2 + $0xb0] sm:$0xff]
    %v384 = vld [vmem:[#allocation2 + $0xb8] sm:$0xff]
    %v385 = vld [vmem:[#allocation2 + $0xc0] sm:$0xff]
    %v386 = vld [vmem:[#allocation2 + $0xc8] sm:$0xff]
    %v387 = vld [vmem:[#allocation2 + $0xd0] sm:$0xff]
    %v388 = vld [vmem:[#allocation2 + $0xd8] sm:$0xff]
    %v389 = vld [vmem:[#allocation2 + $0xe0] sm:$0xff]
    %v390 = vld [vmem:[#allocation2 + $0xe8] sm:$0xff]
    %v391 = vld [vmem:[#allocation2 + $0xf0] sm:$0xff]
    %v392 = vld [vmem:[#allocation2 + $0xf8] sm:$0xff]
    %v393 = vld [vmem:[#allocation2 + $0x100] sm:$0xff]
    %v394 = vld [vmem:[#allocation2 + $0x108] sm:$0xff]
    %v395 = vld [vmem:[#allocation2 + $0x110] sm:$0xff]
    %v396 = vld [vmem:[#allocation2 + $0x118] sm:$0xff]
    %v397 = vld [vmem:[#allocation2 + $0x120] sm:$0xff]
    %v398 = vld [vmem:[#allocation2 + $0x128] sm:$0xff]
    %v399 = vld [vmem:[#allocation2 + $0x130] sm:$0xff]
    %v400 = vld [vmem:[#allocation2 + $0x138] sm:$0xff]
    %v401 = vld [vmem:[#allocation2 + $0x140] sm:$0xff]
    %v402 = vld [vmem:[#allocation2 + $0x148] sm:$0xff]
    %v403 = vld [vmem:[#allocation2 + $0x150] sm:$0xff]
    %v404 = vld [vmem:[#allocation2 + $0x158] sm:$0xff]
    %v405 = vld [vmem:[#allocation2 + $0x160] sm:$0xff]
    %v406 = vld [vmem:[#allocation2 + $0x168] sm:$0xff]
    %v407 = vld [vmem:[#allocation2 + $0x170] sm:$0xff]
    %v408 = vld [vmem:[#allocation2 + $0x178] sm:$0xff]
    %v409 = vld [vmem:[#allocation2 + $0x180] sm:$0xff]
    %v410 = vld [vmem:[#allocation2 + $0x188] sm:$0xff]
    %v411 = vld [vmem:[#allocation2 + $0x190] sm:$0xff]
    %v412 = vld [vmem:[#allocation2 + $0x198] sm:$0xff]
    %v413 = vld [vmem:[#allocation2 + $0x1a0] sm:$0xff]
    %v414 = vld [vmem:[#allocation2 + $0x1a8] sm:$0xff]
    %v415 = vld [vmem:[#allocation2 + $0x1b0] sm:$0xff]
    %v416 = vld [vmem:[#allocation2 + $0x1b8] sm:$0xff]
    %v417 = vld [vmem:[#allocation2 + $0x1c0] sm:$0xff]
    %v418 = vld [vmem:[#allocation2 + $0x1c8] sm:$0xff]
    %v419 = vld [vmem:[#allocation2 + $0x1d0] sm:$0xff]
    %v420 = vld [vmem:[#allocation2 + $0x1d8] sm:$0xff]
    %v421 = vld [vmem:[#allocation2 + $0x1e0] sm:$0xff]
    %v422 = vld [vmem:[#allocation2 + $0x1e8] sm:$0xff]
    %v423 = vld [vmem:[#allocation2 + $0x1f0] sm:$0xff]
    %v424 = vld [vmem:[#allocation2 + $0x1f8] sm:$0xff]
    %v425 = vld [vmem:[#allocation2 + $0x200] sm:$0xff]
    %v426 = vld [vmem:[#allocation2 + $0x208] sm:$0xff]
    %v427 = vld [vmem:[#allocation2 + $0x210] sm:$0xff]
    %v428 = vld [vmem:[#allocation2 + $0x218] sm:$0xff]
    %v429 = vld [vmem:[#allocation2 + $0x220] sm:$0xff]
    %v430 = vld [vmem:[#allocation2 + $0x228] sm:$0xff]
    %v431 = vld [vmem:[#allocation2 + $0x230] sm:$0xff]
    %v432 = vld [vmem:[#allocation2 + $0x238] sm:$0xff]
    %v433 = vld [vmem:[#allocation2 + $0x240] sm:$0xff]
    %v434 = vld [vmem:[#allocation2 + $0x248] sm:$0xff]
    %v435 = vld [vmem:[#allocation2 + $0x250] sm:$0xff]
    %v436 = vld [vmem:[#allocation2 + $0x258] sm:$0xff]
    %v437 = vld [vmem:[#allocation2 + $0x260] sm:$0xff]
    %v438 = vld [vmem:[#allocation2 + $0x268] sm:$0xff]
    %v439 = vld [vmem:[#allocation2 + $0x270] sm:$0xff]
    %v440 = vld [vmem:[#allocation2 + $0x278] sm:$0xff]
    %v441 = vld [vmem:[#allocation2 + $0x280] sm:$0xff]
    %v442 = vld [vmem:[#allocation2 + $0x288] sm:$0xff]
    %v443 = vld [vmem:[#allocation2 + $0x290] sm:$0xff]
    %v444 = vld [vmem:[#allocation2 + $0x298] sm:$0xff]
    %v445 = vld [vmem:[#allocation2 + $0x2a0] sm:$0xff]
    %v446 = vld [vmem:[#allocation2 + $0x2a8] sm:$0xff]
    %v447 = vld [vmem:[#allocation2 + $0x2b0] sm:$0xff]
    %v448 = vld [vmem:[#allocation2 + $0x2b8] sm:$0xff]
    %v449 = vld [vmem:[#allocation2 + $0x2c0] sm:$0xff]
    %v450 = vld [vmem:[#allocation2 + $0x2c8] sm:$0xff]
    %v451 = vld [vmem:[#allocation2 + $0x2d0] sm:$0xff]
    %v452 = vld [vmem:[#allocation2 + $0x2d8] sm:$0xff]
    %v453 = vld [vmem:[#allocation2 + $0x2e0] sm:$0xff]
    %v454 = vld [vmem:[#allocation2 + $0x2e8] sm:$0xff]
    %v455 = vld [vmem:[#allocation2 + $0x2f0] sm:$0xff]
    %v456 = vld [vmem:[#allocation2 + $0x2f8] sm:$0xff]
    %v457 = vld [vmem:[#allocation2 + $0x300] sm:$0xff]
    %v458 = vld [vmem:[#allocation2 + $0x308] sm:$0xff]
    %v459 = vld [vmem:[#allocation2 + $0x310] sm:$0xff]
    %v460 = vld [vmem:[#allocation2 + $0x318] sm:$0xff]
    %v461 = vld [vmem:[#allocation2 + $0x320] sm:$0xff]
    %v462 = vld [vmem:[#allocation2 + $0x328] sm:$0xff]
    %v463 = vld [vmem:[#allocation2 + $0x330] sm:$0xff]
    %v464 = vld [vmem:[#allocation2 + $0x338] sm:$0xff]
    %v465 = vld [vmem:[#allocation2 + $0x340] sm:$0xff]
    %v466 = vld [vmem:[#allocation2 + $0x348] sm:$0xff]
    %v467 = vld [vmem:[#allocation2 + $0x350] sm:$0xff]
    %v468 = vld [vmem:[#allocation2 + $0x358] sm:$0xff]
    %v469 = vld [vmem:[#allocation2 + $0x360] sm:$0xff]
    %v470 = vld [vmem:[#allocation2 + $0x368] sm:$0xff]
    %v471 = vld [vmem:[#allocation2 + $0x370] sm:$0xff]
    %v472 = vld [vmem:[#allocation2 + $0x378] sm:$0xff]
    %v473 = vld [vmem:[#allocation2 + $0x380] sm:$0xff]
    %v474 = vld [vmem:[#allocation2 + $0x388] sm:$0xff]
    %v475 = vld [vmem:[#allocation2 + $0x390] sm:$0xff]
    %v476 = vld [vmem:[#allocation2 + $0x398] sm:$0xff]
    %v477 = vld [vmem:[#allocation2 + $0x3a0] sm:$0xff]
    %v478 = vld [vmem:[#allocation2 + $0x3a8] sm:$0xff]
    %v479 = vld [vmem:[#allocation2 + $0x3b0] sm:$0xff]
    %v480 = vld [vmem:[#allocation2 + $0x3b8] sm:$0xff]
    %v481 = vld [vmem:[#allocation2 + $0x3c0] sm:$0xff]
    %v482 = vld [vmem:[#allocation2 + $0x3c8] sm:$0xff]
    %v483 = vld [vmem:[#allocation2 + $0x3d0] sm:$0xff]
    %v484 = vld [vmem:[#allocation2 + $0x3d8] sm:$0xff]
    %v485 = vld [vmem:[#allocation2 + $0x3e0] sm:$0xff]
    %v486 = vld [vmem:[#allocation2 + $0x3e8] sm:$0xff]
    %v487 = vld [vmem:[#allocation2 + $0x3f0] sm:$0xff]
    %v488 = vld [vmem:[#allocation2 + $0x3f8] sm:$0xff]
    %v489 = vld [vmem:[#allocation2 + $0x400] sm:$0xff]
    %v490 = vld [vmem:[#allocation2 + $0x408] sm:$0xff]
    %v491 = vld [vmem:[#allocation2 + $0x410] sm:$0xff]
    %v492 = vld [vmem:[#allocation2 + $0x418] sm:$0xff]
    %v493 = vld [vmem:[#allocation2 + $0x420] sm:$0xff]
    %v494 = vld [vmem:[#allocation2 + $0x428] sm:$0xff]
    %v495 = vld [vmem:[#allocation2 + $0x430] sm:$0xff]
    %v496 = vld [vmem:[#allocation2 + $0x438] sm:$0xff]
    %v497 = vld [vmem:[#allocation2 + $0x440] sm:$0xff]
    %v498 = vld [vmem:[#allocation2 + $0x448] sm:$0xff]
    %v499 = vld [vmem:[#allocation2 + $0x450] sm:$0xff]
    %v500 = vld [vmem:[#allocation2 + $0x458] sm:$0xff]
    %v501 = vld [vmem:[#allocation2 + $0x460] sm:$0xff]
    %v502 = vld [vmem:[#allocation2 + $0x468] sm:$0xff]
    %v503 = vld [vmem:[#allocation2 + $0x470] sm:$0xff]
    %v504 = vld [vmem:[#allocation2 + $0x478] sm:$0xff]
    %v505 = vld [vmem:[#allocation2 + $0x480] sm:$0xff]
    %v506 = vld [vmem:[#allocation2 + $0x488] sm:$0xff]
    %v507 = vld [vmem:[#allocation2 + $0x490] sm:$0xff]
    %v508 = vld [vmem:[#allocation2 + $0x498] sm:$0xff]
    %v509 = vld [vmem:[#allocation2 + $0x4a0] sm:$0xff]
    %v510 = vld [vmem:[#allocation2 + $0x4a8] sm:$0xff]
    %v511 = vld [vmem:[#allocation2 + $0x4b0] sm:$0xff]
    %v512 = vld [vmem:[#allocation2 + $0x4b8] sm:$0xff]
    %v513 = vld [vmem:[#allocation2 + $0x4c0] sm:$0xff]
    %v514 = vld [vmem:[#allocation2 + $0x4c8] sm:$0xff]
    %v515 = vld [vmem:[#allocation2 + $0x4d0] sm:$0xff]
    %v516 = vld [vmem:[#allocation2 + $0x4d8] sm:$0xff]
    %v517 = vld [vmem:[#allocation2 + $0x4e0] sm:$0xff]
    %v518 = vld [vmem:[#allocation2 + $0x4e8] sm:$0xff]
    %v519 = vld [vmem:[#allocation2 + $0x4f0] sm:$0xff]
    %v520 = vld [vmem:[#allocation2 + $0x4f8] sm:$0xff]
    %v521 = vld [vmem:[#allocation2 + $0x500] sm:$0xff]
    %v522 = vld [vmem:[#allocation2 + $0x508] sm:$0xff]
    %v523 = vld [vmem:[#allocation2 + $0x510] sm:$0xff]
    %v524 = vld [vmem:[#allocation2 + $0x518] sm:$0xff]
    %v525 = vld [vmem:[#allocation2 + $0x520] sm:$0xff]
    %v526 = vld [vmem:[#allocation2 + $0x528] sm:$0xff]
    %v527 = vld [vmem:[#allocation2 + $0x530] sm:$0xff]
    %v528 = vld [vmem:[#allocation2 + $0x538] sm:$0xff]
    %v529 = vld [vmem:[#allocation2 + $0x540] sm:$0xff]
    %v530 = vld [vmem:[#allocation2 + $0x548] sm:$0xff]
    %v531 = vld [vmem:[#allocation2 + $0x550] sm:$0xff]
    %v532 = vld [vmem:[#allocation2 + $0x558] sm:$0xff]
    %v533 = vld [vmem:[#allocation2 + $0x560] sm:$0xff]
    %v534 = vld [vmem:[#allocation2 + $0x568] sm:$0xff]
    %v535 = vld [vmem:[#allocation2 + $0x570] sm:$0xff]
    %v536 = vld [vmem:[#allocation2 + $0x578] sm:$0xff]
    %v537 = vld [vmem:[#allocation2 + $0x580] sm:$0xff]
    %v538 = vld [vmem:[#allocation2 + $0x588] sm:$0xff]
    %v539 = vld [vmem:[#allocation2 + $0x590] sm:$0xff]
    %v540 = vld [vmem:[#allocation2 + $0x598] sm:$0xff]
    %v541 = vld [vmem:[#allocation2 + $0x5a0] sm:$0xff]
    %v542 = vld [vmem:[#allocation2 + $0x5a8] sm:$0xff]
    %v543 = vld [vmem:[#allocation2 + $0x5b0] sm:$0xff]
    %v544 = vld [vmem:[#allocation2 + $0x5b8] sm:$0xff]
    %v545 = vld [vmem:[#allocation2 + $0x5c0] sm:$0xff]
    %v546 = vld [vmem:[#allocation2 + $0x5c8] sm:$0xff]
    %v547 = vld [vmem:[#allocation2 + $0x5d0] sm:$0xff]
    %v548 = vld [vmem:[#allocation2 + $0x5d8] sm:$0xff]
    %v549 = vld [vmem:[#allocation2 + $0x5e0] sm:$0xff]
    %v550 = vld [vmem:[#allocation2 + $0x5e8] sm:$0xff]
    %v551 = vld [vmem:[#allocation2 + $0x5f0] sm:$0xff]
    %v552 = vld [vmem:[#allocation2 + $0x5f8] sm:$0xff]
    %v553 = vld [vmem:[#allocation2 + $0x600] sm:$0xff]
    %v554 = vld [vmem:[#allocation2 + $0x608] sm:$0xff]
    %v555 = vld [vmem:[#allocation2 + $0x610] sm:$0xff]
    %v556 = vld [vmem:[#allocation2 + $0x618] sm:$0xff]
    %v557 = vld [vmem:[#allocation2 + $0x620] sm:$0xff]
    %v558 = vld [vmem:[#allocation2 + $0x628] sm:$0xff]
    %v559 = vld [vmem:[#allocation2 + $0x630] sm:$0xff]
    %v560 = vld [vmem:[#allocation2 + $0x638] sm:$0xff]
    %v561 = vld [vmem:[#allocation2 + $0x640] sm:$0xff]
    %v562 = vld [vmem:[#allocation2 + $0x648] sm:$0xff]
    %v563 = vld [vmem:[#allocation2 + $0x650] sm:$0xff]
    %v564 = vld [vmem:[#allocation2 + $0x658] sm:$0xff]
    %v565 = vld [vmem:[#allocation2 + $0x660] sm:$0xff]
    %v566 = vld [vmem:[#allocation2 + $0x668] sm:$0xff]
    %v567 = vld [vmem:[#allocation2 + $0x670] sm:$0xff]
    %v568 = vld [vmem:[#allocation2 + $0x678] sm:$0xff]
    %v569 = vld [vmem:[#allocation2 + $0x680] sm:$0xff]
    %v570 = vld [vmem:[#allocation2 + $0x688] sm:$0xff]
    %v571 = vld [vmem:[#allocation2 + $0x690] sm:$0xff]
    %v572 = vld [vmem:[#allocation2 + $0x698] sm:$0xff]
    %v573 = vld [vmem:[#allocation2 + $0x6a0] sm:$0xff]
    %v574 = vld [vmem:[#allocation2 + $0x6a8] sm:$0xff]
    %v575 = vld [vmem:[#allocation2 + $0x6b0] sm:$0xff]
    %v576 = vld [vmem:[#allocation2 + $0x6b8] sm:$0xff]
    %v577 = vld [vmem:[#allocation2 + $0x6c0] sm:$0xff]
    %v578 = vld [vmem:[#allocation2 + $0x6c8] sm:$0xff]
    %v579 = vld [vmem:[#allocation2 + $0x6d0] sm:$0xff]
    %v580 = vld [vmem:[#allocation2 + $0x6d8] sm:$0xff]
    %v581 = vld [vmem:[#allocation2 + $0x6e0] sm:$0xff]
    %v582 = vld [vmem:[#allocation2 + $0x6e8] sm:$0xff]
    %v583 = vld [vmem:[#allocation2 + $0x6f0] sm:$0xff]
    %v584 = vld [vmem:[#allocation2 + $0x6f8] sm:$0xff]
    %v585 = vld [vmem:[#allocation2 + $0x700] sm:$0xff]
    %v586 = vld [vmem:[#allocation2 + $0x708] sm:$0xff]
    %v587 = vld [vmem:[#allocation2 + $0x710] sm:$0xff]
    %v588 = vld [vmem:[#allocation2 + $0x718] sm:$0xff]
    %v589 = vld [vmem:[#allocation2 + $0x720] sm:$0xff]
    %v590 = vld [vmem:[#allocation2 + $0x728] sm:$0xff]
    %v591 = vld [vmem:[#allocation2 + $0x730] sm:$0xff]
    %v592 = vld [vmem:[#allocation2 + $0x738] sm:$0xff]
    %v593 = vld [vmem:[#allocation2 + $0x740] sm:$0xff]
    %v594 = vld [vmem:[#allocation2 + $0x748] sm:$0xff]
    %v595 = vld [vmem:[#allocation2 + $0x750] sm:$0xff]
    %v596 = vld [vmem:[#allocation2 + $0x758] sm:$0xff]
    %v597 = vld [vmem:[#allocation2 + $0x760] sm:$0xff]
    %v598 = vld [vmem:[#allocation2 + $0x768] sm:$0xff]
    %v599 = vld [vmem:[#allocation2 + $0x770] sm:$0xff]
    %v600 = vld [vmem:[#allocation2 + $0x778] sm:$0xff]
    %v601 = vld [vmem:[#allocation2 + $0x780] sm:$0xff]
    %v602 = vld [vmem:[#allocation2 + $0x788] sm:$0xff]
    %v603 = vld [vmem:[#allocation2 + $0x790] sm:$0xff]
    %v604 = vld [vmem:[#allocation2 + $0x798] sm:$0xff]
    %v605 = vld [vmem:[#allocation2 + $0x7a0] sm:$0xff]
    %v606 = vld [vmem:[#allocation2 + $0x7a8] sm:$0xff]
    %v607 = vld [vmem:[#allocation2 + $0x7b0] sm:$0xff]
    %v608 = vld [vmem:[#allocation2 + $0x7b8] sm:$0xff]
    %v609 = vld [vmem:[#allocation2 + $0x7c0] sm:$0xff]
    %v610 = vld [vmem:[#allocation2 + $0x7c8] sm:$0xff]
    %v611 = vld [vmem:[#allocation2 + $0x7d0] sm:$0xff]
    %v612 = vld [vmem:[#allocation2 + $0x7d8] sm:$0xff]
    %v613 = vld [vmem:[#allocation2 + $0x7e0] sm:$0xff]
    %v614 = vld [vmem:[#allocation2 + $0x7e8] sm:$0xff]
    %v615 = vld [vmem:[#allocation2 + $0x7f0] sm:$0xff]
    %v616 = vld [vmem:[#allocation2 + $0x7f8] sm:$0xff]
    %v617 = vunpack.c.l.s8.bf16 %v361
    %v618 = vunpack.c.l.s8.bf16 %v362
    %v619 = vunpack.c.l.s8.bf16 %v363
    %v620 = vunpack.c.l.s8.bf16 %v364
    %v621 = vunpack.c.l.s8.bf16 %v365
    %v622 = vunpack.c.l.s8.bf16 %v366
    %v623 = vunpack.c.l.s8.bf16 %v367
    %v624 = vunpack.c.l.s8.bf16 %v368
    %v625 = vunpack.c.h.s8.bf16 %v361
    %v626 = vunpack.c.h.s8.bf16 %v362
    %v627 = vunpack.c.h.s8.bf16 %v363
    %v628 = vunpack.c.h.s8.bf16 %v364
    %v629 = vunpack.c.h.s8.bf16 %v365
    %v630 = vunpack.c.h.s8.bf16 %v366
    %v631 = vunpack.c.h.s8.bf16 %v367
    %v632 = vunpack.c.h.s8.bf16 %v368
    %v633 = vunpack.c.l.s8.bf16 %v369
    %v634 = vunpack.c.l.s8.bf16 %v370
    %v635 = vunpack.c.l.s8.bf16 %v371
    %v636 = vunpack.c.l.s8.bf16 %v372
    %v637 = vunpack.c.l.s8.bf16 %v373
    %v638 = vunpack.c.l.s8.bf16 %v374
    %v639 = vunpack.c.l.s8.bf16 %v375
    %v640 = vunpack.c.l.s8.bf16 %v376
    %v641 = vunpack.c.h.s8.bf16 %v369
    %v642 = vunpack.c.h.s8.bf16 %v370
    %v643 = vunpack.c.h.s8.bf16 %v371
    %v644 = vunpack.c.h.s8.bf16 %v372
    %v645 = vunpack.c.h.s8.bf16 %v373
    %v646 = vunpack.c.h.s8.bf16 %v374
    %v647 = vunpack.c.h.s8.bf16 %v375
    %v648 = vunpack.c.h.s8.bf16 %v376
    %v649 = vunpack.c.l.s8.bf16 %v377
    %v650 = vunpack.c.l.s8.bf16 %v378
    %v651 = vunpack.c.l.s8.bf16 %v379
    %v652 = vunpack.c.l.s8.bf16 %v380
    %v653 = vunpack.c.l.s8.bf16 %v381
    %v654 = vunpack.c.l.s8.bf16 %v382
    %v655 = vunpack.c.l.s8.bf16 %v383
    %v656 = vunpack.c.l.s8.bf16 %v384
    %v657 = vunpack.c.h.s8.bf16 %v377
    %v658 = vunpack.c.h.s8.bf16 %v378
    %v659 = vunpack.c.h.s8.bf16 %v379
    %v660 = vunpack.c.h.s8.bf16 %v380
    %v661 = vunpack.c.h.s8.bf16 %v381
    %v662 = vunpack.c.h.s8.bf16 %v382
    %v663 = vunpack.c.h.s8.bf16 %v383
    %v664 = vunpack.c.h.s8.bf16 %v384
    %v665 = vunpack.c.l.s8.bf16 %v385
    %v666 = vunpack.c.l.s8.bf16 %v386
    %v667 = vunpack.c.l.s8.bf16 %v387
    %v668 = vunpack.c.l.s8.bf16 %v388
    %v669 = vunpack.c.l.s8.bf16 %v389
    %v670 = vunpack.c.l.s8.bf16 %v390
    %v671 = vunpack.c.l.s8.bf16 %v391
    %v672 = vunpack.c.l.s8.bf16 %v392
    %v673 = vunpack.c.h.s8.bf16 %v385
    %v674 = vunpack.c.h.s8.bf16 %v386
    %v675 = vunpack.c.h.s8.bf16 %v387
    %v676 = vunpack.c.h.s8.bf16 %v388
    %v677 = vunpack.c.h.s8.bf16 %v389
    %v678 = vunpack.c.h.s8.bf16 %v390
    %v679 = vunpack.c.h.s8.bf16 %v391
    %v680 = vunpack.c.h.s8.bf16 %v392
    %v681 = vunpack.c.l.s8.bf16 %v393
    %v682 = vunpack.c.l.s8.bf16 %v394
    %v683 = vunpack.c.l.s8.bf16 %v395
    %v684 = vunpack.c.l.s8.bf16 %v396
    %v685 = vunpack.c.l.s8.bf16 %v397
    %v686 = vunpack.c.l.s8.bf16 %v398
    %v687 = vunpack.c.l.s8.bf16 %v399
    %v688 = vunpack.c.l.s8.bf16 %v400
    %v689 = vunpack.c.h.s8.bf16 %v393
    %v690 = vunpack.c.h.s8.bf16 %v394
    %v691 = vunpack.c.h.s8.bf16 %v395
    %v692 = vunpack.c.h.s8.bf16 %v396
    %v693 = vunpack.c.h.s8.bf16 %v397
    %v694 = vunpack.c.h.s8.bf16 %v398
    %v695 = vunpack.c.h.s8.bf16 %v399
    %v696 = vunpack.c.h.s8.bf16 %v400
    %v697 = vunpack.c.l.s8.bf16 %v401
    %v698 = vunpack.c.l.s8.bf16 %v402
    %v699 = vunpack.c.l.s8.bf16 %v403
    %v700 = vunpack.c.l.s8.bf16 %v404
    %v701 = vunpack.c.l.s8.bf16 %v405
    %v702 = vunpack.c.l.s8.bf16 %v406
    %v703 = vunpack.c.l.s8.bf16 %v407
    %v704 = vunpack.c.l.s8.bf16 %v408
    %v705 = vunpack.c.h.s8.bf16 %v401
    %v706 = vunpack.c.h.s8.bf16 %v402
    %v707 = vunpack.c.h.s8.bf16 %v403
    %v708 = vunpack.c.h.s8.bf16 %v404
    %v709 = vunpack.c.h.s8.bf16 %v405
    %v710 = vunpack.c.h.s8.bf16 %v406
    %v711 = vunpack.c.h.s8.bf16 %v407
    %v712 = vunpack.c.h.s8.bf16 %v408
    %v713 = vunpack.c.l.s8.bf16 %v409
    %v714 = vunpack.c.l.s8.bf16 %v410
    %v715 = vunpack.c.l.s8.bf16 %v411
    %v716 = vunpack.c.l.s8.bf16 %v412
    %v717 = vunpack.c.l.s8.bf16 %v413
    %v718 = vunpack.c.l.s8.bf16 %v414
    %v719 = vunpack.c.l.s8.bf16 %v415
    %v720 = vunpack.c.l.s8.bf16 %v416
    %v721 = vunpack.c.h.s8.bf16 %v409
    %v722 = vunpack.c.h.s8.bf16 %v410
    %v723 = vunpack.c.h.s8.bf16 %v411
    %v724 = vunpack.c.h.s8.bf16 %v412
    %v725 = vunpack.c.h.s8.bf16 %v413
    %v726 = vunpack.c.h.s8.bf16 %v414
    %v727 = vunpack.c.h.s8.bf16 %v415
    %v728 = vunpack.c.h.s8.bf16 %v416
    %v729 = vunpack.c.l.s8.bf16 %v417
    %v730 = vunpack.c.l.s8.bf16 %v418
    %v731 = vunpack.c.l.s8.bf16 %v419
    %v732 = vunpack.c.l.s8.bf16 %v420
    %v733 = vunpack.c.l.s8.bf16 %v421
    %v734 = vunpack.c.l.s8.bf16 %v422
    %v735 = vunpack.c.l.s8.bf16 %v423
    %v736 = vunpack.c.l.s8.bf16 %v424
    %v737 = vunpack.c.h.s8.bf16 %v417
    %v738 = vunpack.c.h.s8.bf16 %v418
    %v739 = vunpack.c.h.s8.bf16 %v419
    %v740 = vunpack.c.h.s8.bf16 %v420
    %v741 = vunpack.c.h.s8.bf16 %v421
    %v742 = vunpack.c.h.s8.bf16 %v422
    %v743 = vunpack.c.h.s8.bf16 %v423
    %v744 = vunpack.c.h.s8.bf16 %v424
    %v745 = vunpack.c.l.s8.bf16 %v425
    %v746 = vunpack.c.l.s8.bf16 %v426
    %v747 = vunpack.c.l.s8.bf16 %v427
    %v748 = vunpack.c.l.s8.bf16 %v428
    %v749 = vunpack.c.l.s8.bf16 %v429
    %v750 = vunpack.c.l.s8.bf16 %v430
    %v751 = vunpack.c.l.s8.bf16 %v431
    %v752 = vunpack.c.l.s8.bf16 %v432
    %v753 = vunpack.c.h.s8.bf16 %v425
    %v754 = vunpack.c.h.s8.bf16 %v426
    %v755 = vunpack.c.h.s8.bf16 %v427
    %v756 = vunpack.c.h.s8.bf16 %v428
    %v757 = vunpack.c.h.s8.bf16 %v429
    %v758 = vunpack.c.h.s8.bf16 %v430
    %v759 = vunpack.c.h.s8.bf16 %v431
    %v760 = vunpack.c.h.s8.bf16 %v432
    %v761 = vunpack.c.l.s8.bf16 %v433
    %v762 = vunpack.c.l.s8.bf16 %v434
    %v763 = vunpack.c.l.s8.bf16 %v435
    %v764 = vunpack.c.l.s8.bf16 %v436
    %v765 = vunpack.c.l.s8.bf16 %v437
    %v766 = vunpack.c.l.s8.bf16 %v438
    %v767 = vunpack.c.l.s8.bf16 %v439
    %v768 = vunpack.c.l.s8.bf16 %v440
    %v769 = vunpack.c.h.s8.bf16 %v433
    %v770 = vunpack.c.h.s8.bf16 %v434
    %v771 = vunpack.c.h.s8.bf16 %v435
    %v772 = vunpack.c.h.s8.bf16 %v436
    %v773 = vunpack.c.h.s8.bf16 %v437
    %v774 = vunpack.c.h.s8.bf16 %v438
    %v775 = vunpack.c.h.s8.bf16 %v439
    %v776 = vunpack.c.h.s8.bf16 %v440
    %v777 = vunpack.c.l.s8.bf16 %v441
    %v778 = vunpack.c.l.s8.bf16 %v442
    %v779 = vunpack.c.l.s8.bf16 %v443
    %v780 = vunpack.c.l.s8.bf16 %v444
    %v781 = vunpack.c.l.s8.bf16 %v445
    %v782 = vunpack.c.l.s8.bf16 %v446
    %v783 = vunpack.c.l.s8.bf16 %v447
    %v784 = vunpack.c.l.s8.bf16 %v448
    %v785 = vunpack.c.h.s8.bf16 %v441
    %v786 = vunpack.c.h.s8.bf16 %v442
    %v787 = vunpack.c.h.s8.bf16 %v443
    %v788 = vunpack.c.h.s8.bf16 %v444
    %v789 = vunpack.c.h.s8.bf16 %v445
    %v790 = vunpack.c.h.s8.bf16 %v446
    %v791 = vunpack.c.h.s8.bf16 %v447
    %v792 = vunpack.c.h.s8.bf16 %v448
    %v793 = vunpack.c.l.s8.bf16 %v449
    %v794 = vunpack.c.l.s8.bf16 %v450
    %v795 = vunpack.c.l.s8.bf16 %v451
    %v796 = vunpack.c.l.s8.bf16 %v452
    %v797 = vunpack.c.l.s8.bf16 %v453
    %v798 = vunpack.c.l.s8.bf16 %v454
    %v799 = vunpack.c.l.s8.bf16 %v455
    %v800 = vunpack.c.l.s8.bf16 %v456
    %v801 = vunpack.c.h.s8.bf16 %v449
    %v802 = vunpack.c.h.s8.bf16 %v450
    %v803 = vunpack.c.h.s8.bf16 %v451
    %v804 = vunpack.c.h.s8.bf16 %v452
    %v805 = vunpack.c.h.s8.bf16 %v453
    %v806 = vunpack.c.h.s8.bf16 %v454
    %v807 = vunpack.c.h.s8.bf16 %v455
    %v808 = vunpack.c.h.s8.bf16 %v456
    %v809 = vunpack.c.l.s8.bf16 %v457
    %v810 = vunpack.c.l.s8.bf16 %v458
    %v811 = vunpack.c.l.s8.bf16 %v459
    %v812 = vunpack.c.l.s8.bf16 %v460
    %v813 = vunpack.c.l.s8.bf16 %v461
    %v814 = vunpack.c.l.s8.bf16 %v462
    %v815 = vunpack.c.l.s8.bf16 %v463
    %v816 = vunpack.c.l.s8.bf16 %v464
    %v817 = vunpack.c.h.s8.bf16 %v457
    %v818 = vunpack.c.h.s8.bf16 %v458
    %v819 = vunpack.c.h.s8.bf16 %v459
    %v820 = vunpack.c.h.s8.bf16 %v460
    %v821 = vunpack.c.h.s8.bf16 %v461
    %v822 = vunpack.c.h.s8.bf16 %v462
    %v823 = vunpack.c.h.s8.bf16 %v463
    %v824 = vunpack.c.h.s8.bf16 %v464
    %v825 = vunpack.c.l.s8.bf16 %v465
    %v826 = vunpack.c.l.s8.bf16 %v466
    %v827 = vunpack.c.l.s8.bf16 %v467
    %v828 = vunpack.c.l.s8.bf16 %v468
    %v829 = vunpack.c.l.s8.bf16 %v469
    %v830 = vunpack.c.l.s8.bf16 %v470
    %v831 = vunpack.c.l.s8.bf16 %v471
    %v832 = vunpack.c.l.s8.bf16 %v472
    %v833 = vunpack.c.h.s8.bf16 %v465
    %v834 = vunpack.c.h.s8.bf16 %v466
    %v835 = vunpack.c.h.s8.bf16 %v467
    %v836 = vunpack.c.h.s8.bf16 %v468
    %v837 = vunpack.c.h.s8.bf16 %v469
    %v838 = vunpack.c.h.s8.bf16 %v470
    %v839 = vunpack.c.h.s8.bf16 %v471
    %v840 = vunpack.c.h.s8.bf16 %v472
    %v841 = vunpack.c.l.s8.bf16 %v473
    %v842 = vunpack.c.l.s8.bf16 %v474
    %v843 = vunpack.c.l.s8.bf16 %v475
    %v844 = vunpack.c.l.s8.bf16 %v476
    %v845 = vunpack.c.l.s8.bf16 %v477
    %v846 = vunpack.c.l.s8.bf16 %v478
    %v847 = vunpack.c.l.s8.bf16 %v479
    %v848 = vunpack.c.l.s8.bf16 %v480
    %v849 = vunpack.c.h.s8.bf16 %v473
    %v850 = vunpack.c.h.s8.bf16 %v474
    %v851 = vunpack.c.h.s8.bf16 %v475
    %v852 = vunpack.c.h.s8.bf16 %v476
    %v853 = vunpack.c.h.s8.bf16 %v477
    %v854 = vunpack.c.h.s8.bf16 %v478
    %v855 = vunpack.c.h.s8.bf16 %v479
    %v856 = vunpack.c.h.s8.bf16 %v480
    %v857 = vunpack.c.l.s8.bf16 %v481
    %v858 = vunpack.c.l.s8.bf16 %v482
    %v859 = vunpack.c.l.s8.bf16 %v483
    %v860 = vunpack.c.l.s8.bf16 %v484
    %v861 = vunpack.c.l.s8.bf16 %v485
    %v862 = vunpack.c.l.s8.bf16 %v486
    %v863 = vunpack.c.l.s8.bf16 %v487
    %v864 = vunpack.c.l.s8.bf16 %v488
    %v865 = vunpack.c.h.s8.bf16 %v481
    %v866 = vunpack.c.h.s8.bf16 %v482
    %v867 = vunpack.c.h.s8.bf16 %v483
    %v868 = vunpack.c.h.s8.bf16 %v484
    %v869 = vunpack.c.h.s8.bf16 %v485
    %v870 = vunpack.c.h.s8.bf16 %v486
    %v871 = vunpack.c.h.s8.bf16 %v487
    %v872 = vunpack.c.h.s8.bf16 %v488
    %v873 = vunpack.c.l.s8.bf16 %v489
    %v874 = vunpack.c.l.s8.bf16 %v490
    %v875 = vunpack.c.l.s8.bf16 %v491
    %v876 = vunpack.c.l.s8.bf16 %v492
    %v877 = vunpack.c.l.s8.bf16 %v493
    %v878 = vunpack.c.l.s8.bf16 %v494
    %v879 = vunpack.c.l.s8.bf16 %v495
    %v880 = vunpack.c.l.s8.bf16 %v496
    %v881 = vunpack.c.h.s8.bf16 %v489
    %v882 = vunpack.c.h.s8.bf16 %v490
    %v883 = vunpack.c.h.s8.bf16 %v491
    %v884 = vunpack.c.h.s8.bf16 %v492
    %v885 = vunpack.c.h.s8.bf16 %v493
    %v886 = vunpack.c.h.s8.bf16 %v494
    %v887 = vunpack.c.h.s8.bf16 %v495
    %v888 = vunpack.c.h.s8.bf16 %v496
    %v889 = vunpack.c.l.s8.bf16 %v497
    %v890 = vunpack.c.l.s8.bf16 %v498
    %v891 = vunpack.c.l.s8.bf16 %v499
    %v892 = vunpack.c.l.s8.bf16 %v500
    %v893 = vunpack.c.l.s8.bf16 %v501
    %v894 = vunpack.c.l.s8.bf16 %v502
    %v895 = vunpack.c.l.s8.bf16 %v503
    %v896 = vunpack.c.l.s8.bf16 %v504
    %v897 = vunpack.c.h.s8.bf16 %v497
    %v898 = vunpack.c.h.s8.bf16 %v498
    %v899 = vunpack.c.h.s8.bf16 %v499
    %v900 = vunpack.c.h.s8.bf16 %v500
    %v901 = vunpack.c.h.s8.bf16 %v501
    %v902 = vunpack.c.h.s8.bf16 %v502
    %v903 = vunpack.c.h.s8.bf16 %v503
    %v904 = vunpack.c.h.s8.bf16 %v504
    %v905 = vunpack.c.l.s8.bf16 %v505
    %v906 = vunpack.c.l.s8.bf16 %v506
    %v907 = vunpack.c.l.s8.bf16 %v507
    %v908 = vunpack.c.l.s8.bf16 %v508
    %v909 = vunpack.c.l.s8.bf16 %v509
    %v910 = vunpack.c.l.s8.bf16 %v510
    %v911 = vunpack.c.l.s8.bf16 %v511
    %v912 = vunpack.c.l.s8.bf16 %v512
    %v913 = vunpack.c.h.s8.bf16 %v505
    %v914 = vunpack.c.h.s8.bf16 %v506
    %v915 = vunpack.c.h.s8.bf16 %v507
    %v916 = vunpack.c.h.s8.bf16 %v508
    %v917 = vunpack.c.h.s8.bf16 %v509
    %v918 = vunpack.c.h.s8.bf16 %v510
    %v919 = vunpack.c.h.s8.bf16 %v511
    %v920 = vunpack.c.h.s8.bf16 %v512
    %v921 = vunpack.c.l.s8.bf16 %v513
    %v922 = vunpack.c.l.s8.bf16 %v514
    %v923 = vunpack.c.l.s8.bf16 %v515
    %v924 = vunpack.c.l.s8.bf16 %v516
    %v925 = vunpack.c.l.s8.bf16 %v517
    %v926 = vunpack.c.l.s8.bf16 %v518
    %v927 = vunpack.c.l.s8.bf16 %v519
    %v928 = vunpack.c.l.s8.bf16 %v520
    %v929 = vunpack.c.h.s8.bf16 %v513
    %v930 = vunpack.c.h.s8.bf16 %v514
    %v931 = vunpack.c.h.s8.bf16 %v515
    %v932 = vunpack.c.h.s8.bf16 %v516
    %v933 = vunpack.c.h.s8.bf16 %v517
    %v934 = vunpack.c.h.s8.bf16 %v518
    %v935 = vunpack.c.h.s8.bf16 %v519
    %v936 = vunpack.c.h.s8.bf16 %v520
    %v937 = vunpack.c.l.s8.bf16 %v521
    %v938 = vunpack.c.l.s8.bf16 %v522
    %v939 = vunpack.c.l.s8.bf16 %v523
    %v940 = vunpack.c.l.s8.bf16 %v524
    %v941 = vunpack.c.l.s8.bf16 %v525
    %v942 = vunpack.c.l.s8.bf16 %v526
    %v943 = vunpack.c.l.s8.bf16 %v527
    %v944 = vunpack.c.l.s8.bf16 %v528
    %v945 = vunpack.c.h.s8.bf16 %v521
    %v946 = vunpack.c.h.s8.bf16 %v522
    %v947 = vunpack.c.h.s8.bf16 %v523
    %v948 = vunpack.c.h.s8.bf16 %v524
    %v949 = vunpack.c.h.s8.bf16 %v525
    %v950 = vunpack.c.h.s8.bf16 %v526
    %v951 = vunpack.c.h.s8.bf16 %v527
    %v952 = vunpack.c.h.s8.bf16 %v528
    %v953 = vunpack.c.l.s8.bf16 %v529
    %v954 = vunpack.c.l.s8.bf16 %v530
    %v955 = vunpack.c.l.s8.bf16 %v531
    %v956 = vunpack.c.l.s8.bf16 %v532
    %v957 = vunpack.c.l.s8.bf16 %v533
    %v958 = vunpack.c.l.s8.bf16 %v534
    %v959 = vunpack.c.l.s8.bf16 %v535
    %v960 = vunpack.c.l.s8.bf16 %v536
    %v961 = vunpack.c.h.s8.bf16 %v529
    %v962 = vunpack.c.h.s8.bf16 %v530
    %v963 = vunpack.c.h.s8.bf16 %v531
    %v964 = vunpack.c.h.s8.bf16 %v532
    %v965 = vunpack.c.h.s8.bf16 %v533
    %v966 = vunpack.c.h.s8.bf16 %v534
    %v967 = vunpack.c.h.s8.bf16 %v535
    %v968 = vunpack.c.h.s8.bf16 %v536
    %v969 = vunpack.c.l.s8.bf16 %v537
    %v970 = vunpack.c.l.s8.bf16 %v538
    %v971 = vunpack.c.l.s8.bf16 %v539
    %v972 = vunpack.c.l.s8.bf16 %v540
    %v973 = vunpack.c.l.s8.bf16 %v541
    %v974 = vunpack.c.l.s8.bf16 %v542
    %v975 = vunpack.c.l.s8.bf16 %v543
    %v976 = vunpack.c.l.s8.bf16 %v544
    %v977 = vunpack.c.h.s8.bf16 %v537
    %v978 = vunpack.c.h.s8.bf16 %v538
    %v979 = vunpack.c.h.s8.bf16 %v539
    %v980 = vunpack.c.h.s8.bf16 %v540
    %v981 = vunpack.c.h.s8.bf16 %v541
    %v982 = vunpack.c.h.s8.bf16 %v542
    %v983 = vunpack.c.h.s8.bf16 %v543
    %v984 = vunpack.c.h.s8.bf16 %v544
    %v985 = vunpack.c.l.s8.bf16 %v545
    %v986 = vunpack.c.l.s8.bf16 %v546
    %v987 = vunpack.c.l.s8.bf16 %v547
    %v988 = vunpack.c.l.s8.bf16 %v548
    %v989 = vunpack.c.l.s8.bf16 %v549
    %v990 = vunpack.c.l.s8.bf16 %v550
    %v991 = vunpack.c.l.s8.bf16 %v551
    %v992 = vunpack.c.l.s8.bf16 %v552
    %v993 = vunpack.c.h.s8.bf16 %v545
    %v994 = vunpack.c.h.s8.bf16 %v546
    %v995 = vunpack.c.h.s8.bf16 %v547
    %v996 = vunpack.c.h.s8.bf16 %v548
    %v997 = vunpack.c.h.s8.bf16 %v549
    %v998 = vunpack.c.h.s8.bf16 %v550
    %v999 = vunpack.c.h.s8.bf16 %v551
    %v1000 = vunpack.c.h.s8.bf16 %v552
    %v1001 = vunpack.c.l.s8.bf16 %v553
    %v1002 = vunpack.c.l.s8.bf16 %v554
    %v1003 = vunpack.c.l.s8.bf16 %v555
    %v1004 = vunpack.c.l.s8.bf16 %v556
    %v1005 = vunpack.c.l.s8.bf16 %v557
    %v1006 = vunpack.c.l.s8.bf16 %v558
    %v1007 = vunpack.c.l.s8.bf16 %v559
    %v1008 = vunpack.c.l.s8.bf16 %v560
    %v1009 = vunpack.c.h.s8.bf16 %v553
    %v1010 = vunpack.c.h.s8.bf16 %v554
    %v1011 = vunpack.c.h.s8.bf16 %v555
    %v1012 = vunpack.c.h.s8.bf16 %v556
    %v1013 = vunpack.c.h.s8.bf16 %v557
    %v1014 = vunpack.c.h.s8.bf16 %v558
    %v1015 = vunpack.c.h.s8.bf16 %v559
    %v1016 = vunpack.c.h.s8.bf16 %v560
    %v1017 = vunpack.c.l.s8.bf16 %v561
    %v1018 = vunpack.c.l.s8.bf16 %v562
    %v1019 = vunpack.c.l.s8.bf16 %v563
    %v1020 = vunpack.c.l.s8.bf16 %v564
    %v1021 = vunpack.c.l.s8.bf16 %v565
    %v1022 = vunpack.c.l.s8.bf16 %v566
    %v1023 = vunpack.c.l.s8.bf16 %v567
    %v1024 = vunpack.c.l.s8.bf16 %v568
    %v1025 = vunpack.c.h.s8.bf16 %v561
    %v1026 = vunpack.c.h.s8.bf16 %v562
    %v1027 = vunpack.c.h.s8.bf16 %v563
    %v1028 = vunpack.c.h.s8.bf16 %v564
    %v1029 = vunpack.c.h.s8.bf16 %v565
    %v1030 = vunpack.c.h.s8.bf16 %v566
    %v1031 = vunpack.c.h.s8.bf16 %v567
    %v1032 = vunpack.c.h.s8.bf16 %v568
    %v1033 = vunpack.c.l.s8.bf16 %v569
    %v1034 = vunpack.c.l.s8.bf16 %v570
    %v1035 = vunpack.c.l.s8.bf16 %v571
    %v1036 = vunpack.c.l.s8.bf16 %v572
    %v1037 = vunpack.c.l.s8.bf16 %v573
    %v1038 = vunpack.c.l.s8.bf16 %v574
    %v1039 = vunpack.c.l.s8.bf16 %v575
    %v1040 = vunpack.c.l.s8.bf16 %v576
    %v1041 = vunpack.c.h.s8.bf16 %v569
    %v1042 = vunpack.c.h.s8.bf16 %v570
    %v1043 = vunpack.c.h.s8.bf16 %v571
    %v1044 = vunpack.c.h.s8.bf16 %v572
    %v1045 = vunpack.c.h.s8.bf16 %v573
    %v1046 = vunpack.c.h.s8.bf16 %v574
    %v1047 = vunpack.c.h.s8.bf16 %v575
    %v1048 = vunpack.c.h.s8.bf16 %v576
    %v1049 = vunpack.c.l.s8.bf16 %v577
    %v1050 = vunpack.c.l.s8.bf16 %v578
    %v1051 = vunpack.c.l.s8.bf16 %v579
    %v1052 = vunpack.c.l.s8.bf16 %v580
    %v1053 = vunpack.c.l.s8.bf16 %v581
    %v1054 = vunpack.c.l.s8.bf16 %v582
    %v1055 = vunpack.c.l.s8.bf16 %v583
    %v1056 = vunpack.c.l.s8.bf16 %v584
    %v1057 = vunpack.c.h.s8.bf16 %v577
    %v1058 = vunpack.c.h.s8.bf16 %v578
    %v1059 = vunpack.c.h.s8.bf16 %v579
    %v1060 = vunpack.c.h.s8.bf16 %v580
    %v1061 = vunpack.c.h.s8.bf16 %v581
    %v1062 = vunpack.c.h.s8.bf16 %v582
    %v1063 = vunpack.c.h.s8.bf16 %v583
    %v1064 = vunpack.c.h.s8.bf16 %v584
    %v1065 = vunpack.c.l.s8.bf16 %v585
    %v1066 = vunpack.c.l.s8.bf16 %v586
    %v1067 = vunpack.c.l.s8.bf16 %v587
    %v1068 = vunpack.c.l.s8.bf16 %v588
    %v1069 = vunpack.c.l.s8.bf16 %v589
    %v1070 = vunpack.c.l.s8.bf16 %v590
    %v1071 = vunpack.c.l.s8.bf16 %v591
    %v1072 = vunpack.c.l.s8.bf16 %v592
    %v1073 = vunpack.c.h.s8.bf16 %v585
    %v1074 = vunpack.c.h.s8.bf16 %v586
    %v1075 = vunpack.c.h.s8.bf16 %v587
    %v1076 = vunpack.c.h.s8.bf16 %v588
    %v1077 = vunpack.c.h.s8.bf16 %v589
    %v1078 = vunpack.c.h.s8.bf16 %v590
    %v1079 = vunpack.c.h.s8.bf16 %v591
    %v1080 = vunpack.c.h.s8.bf16 %v592
    %v1081 = vunpack.c.l.s8.bf16 %v593
    %v1082 = vunpack.c.l.s8.bf16 %v594
    %v1083 = vunpack.c.l.s8.bf16 %v595
    %v1084 = vunpack.c.l.s8.bf16 %v596
    %v1085 = vunpack.c.l.s8.bf16 %v597
    %v1086 = vunpack.c.l.s8.bf16 %v598
    %v1087 = vunpack.c.l.s8.bf16 %v599
    %v1088 = vunpack.c.l.s8.bf16 %v600
    %v1089 = vunpack.c.h.s8.bf16 %v593
    %v1090 = vunpack.c.h.s8.bf16 %v594
    %v1091 = vunpack.c.h.s8.bf16 %v595
    %v1092 = vunpack.c.h.s8.bf16 %v596
    %v1093 = vunpack.c.h.s8.bf16 %v597
    %v1094 = vunpack.c.h.s8.bf16 %v598
    %v1095 = vunpack.c.h.s8.bf16 %v599
    %v1096 = vunpack.c.h.s8.bf16 %v600
    %v1097 = vunpack.c.l.s8.bf16 %v601
    %v1098 = vunpack.c.l.s8.bf16 %v602
    %v1099 = vunpack.c.l.s8.bf16 %v603
    %v1100 = vunpack.c.l.s8.bf16 %v604
    %v1101 = vunpack.c.l.s8.bf16 %v605
    %v1102 = vunpack.c.l.s8.bf16 %v606
    %v1103 = vunpack.c.l.s8.bf16 %v607
    %v1104 = vunpack.c.l.s8.bf16 %v608
    %v1105 = vunpack.c.h.s8.bf16 %v601
    %v1106 = vunpack.c.h.s8.bf16 %v602
    %v1107 = vunpack.c.h.s8.bf16 %v603
    %v1108 = vunpack.c.h.s8.bf16 %v604
    %v1109 = vunpack.c.h.s8.bf16 %v605
    %v1110 = vunpack.c.h.s8.bf16 %v606
    %v1111 = vunpack.c.h.s8.bf16 %v607
    %v1112 = vunpack.c.h.s8.bf16 %v608
    %v1113 = vunpack.c.l.s8.bf16 %v609
    %v1114 = vunpack.c.l.s8.bf16 %v610
    %v1115 = vunpack.c.l.s8.bf16 %v611
    %v1116 = vunpack.c.l.s8.bf16 %v612
    %v1117 = vunpack.c.l.s8.bf16 %v613
    %v1118 = vunpack.c.l.s8.bf16 %v614
    %v1119 = vunpack.c.l.s8.bf16 %v615
    %v1120 = vunpack.c.l.s8.bf16 %v616
    %v1121 = vunpack.c.h.s8.bf16 %v609
    %v1122 = vunpack.c.h.s8.bf16 %v610
    %v1123 = vunpack.c.h.s8.bf16 %v611
    %v1124 = vunpack.c.h.s8.bf16 %v612
    %v1125 = vunpack.c.h.s8.bf16 %v613
    %v1126 = vunpack.c.h.s8.bf16 %v614
    %v1127 = vunpack.c.h.s8.bf16 %v615
    %v1128 = vunpack.c.h.s8.bf16 %v616
    %v1129 = vpack.c.bf16 %v353, %v353
    %v1130 = vpack.c.bf16 %v354, %v354
    %v1131 = vpack.c.bf16 %v355, %v355
    %v1132 = vpack.c.bf16 %v356, %v356
    %v1133 = vpack.c.bf16 %v357, %v357
    %v1134 = vpack.c.bf16 %v358, %v358
    %v1135 = vpack.c.bf16 %v359, %v359
    %v1136 = vpack.c.bf16 %v360, %v360
    %1137 = vmatprep.subr.bf16.mxu0 %v674
    %1138 = vmatpush1.bf16.msra.mxu0 %v673
    %1139 = vmatprep.subr.bf16.mxu0 %v666
    %1140 = vmatpush1.bf16.msra.mxu0 %v665
    %1141 = vmatprep.subr.bf16.mxu0 %v658
    %1142 = vmatpush1.bf16.msra.mxu0 %v657
    %1143 = vmatprep.subr.bf16.mxu0 %v650
    %1144 = vmatpush1.bf16.msra.mxu0 %v649
    %1145 = vmatprep.subr.bf16.mxu0 %v642
    %1146 = vmatpush1.bf16.msra.mxu0 %v641
    %1147 = vmatprep.subr.bf16.mxu0 %v634
    %1148 = vmatpush1.bf16.msra.mxu0 %v633
    %1149 = vmatprep.subr.bf16.mxu0 %v626
    %1150 = vmatpush1.bf16.msra.mxu0 %v625
    %1151 = vmatprep.subr.bf16.mxu0 %v618
    %1152 = vmatpush1.bf16.msra.mxu0 %v617
    %1153 = vmatprep.subr.bf16.mxu0 %v738
    %1154 = vmatpush2.bf16.msra.mxu0 %v737
    %1155 = vmatprep.subr.bf16.mxu0 %v730
    %1156 = vmatpush2.bf16.msra.mxu0 %v729
    %1157 = vmatprep.subr.bf16.mxu0 %v722
    %1158 = vmatpush2.bf16.msra.mxu0 %v721
    %1159 = vmatprep.subr.bf16.mxu0 %v714
    %1160 = vmatpush2.bf16.msra.mxu0 %v713
    %1161 = vmatprep.subr.bf16.mxu0 %v706
    %1162 = vmatpush2.bf16.msra.mxu0 %v705
    %1163 = vmatprep.subr.bf16.mxu0 %v698
    %1164 = vmatpush2.bf16.msra.mxu0 %v697
    %1165 = vmatprep.subr.bf16.mxu0 %v690
    %1166 = vmatpush2.bf16.msra.mxu0 %v689
    %1167 = vmatprep.subr.bf16.mxu0 %v682
    %1168 = vmatpush2.bf16.msra.mxu0 %v681
    %1169 = vmatprep.mubr.bf16.mxu0 %v1130
    %1170 = vmatmul.mubr.bf16.gmra.mxu0 %v1129
    %v1171 = vpop.f32.mrf.mxu0
    %v1172 = vadd.f32 0.0, %v1171
    %v1173 = vpop.f32.mrf.mxu0
    %v1174 = vadd.f32 0.0, %v1173
    %v1175 = vpop.f32.mrf.mxu0
    %v1176 = vpop.f32.mrf.mxu0
    %1177 = vdwg.mxu0
    %1178 = vmatprep.subr.bf16.mxu0 %v802
    %1179 = vmatpush1.bf16.msra.mxu0 %v801
    %1180 = vmatprep.subr.bf16.mxu0 %v794
    %1181 = vmatpush1.bf16.msra.mxu0 %v793
    %1182 = vmatprep.subr.bf16.mxu0 %v786
    %1183 = vmatpush1.bf16.msra.mxu0 %v785
    %1184 = vmatprep.subr.bf16.mxu0 %v778
    %1185 = vmatpush1.bf16.msra.mxu0 %v777
    %1186 = vmatprep.subr.bf16.mxu0 %v770
    %1187 = vmatpush1.bf16.msra.mxu0 %v769
    %1188 = vmatprep.subr.bf16.mxu0 %v762
    %1189 = vmatpush1.bf16.msra.mxu0 %v761
    %1190 = vmatprep.subr.bf16.mxu0 %v754
    %1191 = vmatpush1.bf16.msra.mxu0 %v753
    %1192 = vmatprep.subr.bf16.mxu0 %v746
    %1193 = vmatpush1.bf16.msra.mxu0 %v745
    %1194 = vmatprep.subr.bf16.mxu0 %v866
    %1195 = vmatpush2.bf16.msra.mxu0 %v865
    %1196 = vmatprep.subr.bf16.mxu0 %v858
    %1197 = vmatpush2.bf16.msra.mxu0 %v857
    %1198 = vmatprep.subr.bf16.mxu0 %v850
    %1199 = vmatpush2.bf16.msra.mxu0 %v849
    %1200 = vmatprep.subr.bf16.mxu0 %v842
    %1201 = vmatpush2.bf16.msra.mxu0 %v841
    %1202 = vmatprep.subr.bf16.mxu0 %v834
    %1203 = vmatpush2.bf16.msra.mxu0 %v833
    %1204 = vmatprep.subr.bf16.mxu0 %v826
    %1205 = vmatpush2.bf16.msra.mxu0 %v825
    %1206 = vmatprep.subr.bf16.mxu0 %v818
    %1207 = vmatpush2.bf16.msra.mxu0 %v817
    %1208 = vmatprep.subr.bf16.mxu0 %v810
    %1209 = vmatpush2.bf16.msra.mxu0 %v809
    %1210 = vmatprep.mubr.bf16.mxu0 %v1132
    %1211 = vmatmul.mubr.bf16.gmra.mxu0 %v1131
    %v1212 = vpop.f32.mrf.mxu0
    %v1213 = vadd.f32 %v1172, %v1212
    %v1214 = vpop.f32.mrf.mxu0
    %v1215 = vadd.f32 %v1174, %v1214
    %v1216 = vpop.f32.mrf.mxu0
    %v1217 = vpop.f32.mrf.mxu0
    %1218 = vdwg.mxu0
    %1219 = vmatprep.subr.bf16.mxu0 %v930
    %1220 = vmatpush1.bf16.msra.mxu0 %v929
    %1221 = vmatprep.subr.bf16.mxu0 %v922
    %1222 = vmatpush1.bf16.msra.mxu0 %v921
    %1223 = vmatprep.subr.bf16.mxu0 %v914
    %1224 = vmatpush1.bf16.msra.mxu0 %v913
    %1225 = vmatprep.subr.bf16.mxu0 %v906
    %1226 = vmatpush1.bf16.msra.mxu0 %v905
    %1227 = vmatprep.subr.bf16.mxu0 %v898
    %1228 = vmatpush1.bf16.msra.mxu0 %v897
    %1229 = vmatprep.subr.bf16.mxu0 %v890
    %1230 = vmatpush1.bf16.msra.mxu0 %v889
    %1231 = vmatprep.subr.bf16.mxu0 %v882
    %1232 = vmatpush1.bf16.msra.mxu0 %v881
    %1233 = vmatprep.subr.bf16.mxu0 %v874
    %1234 = vmatpush1.bf16.msra.mxu0 %v873
    %1235 = vmatprep.subr.bf16.mxu0 %v994
    %1236 = vmatpush2.bf16.msra.mxu0 %v993
    %1237 = vmatprep.subr.bf16.mxu0 %v986
    %1238 = vmatpush2.bf16.msra.mxu0 %v985
    %1239 = vmatprep.subr.bf16.mxu0 %v978
    %1240 = vmatpush2.bf16.msra.mxu0 %v977
    %1241 = vmatprep.subr.bf16.mxu0 %v970
    %1242 = vmatpush2.bf16.msra.mxu0 %v969
    %1243 = vmatprep.subr.bf16.mxu0 %v962
    %1244 = vmatpush2.bf16.msra.mxu0 %v961
    %1245 = vmatprep.subr.bf16.mxu0 %v954
    %1246 = vmatpush2.bf16.msra.mxu0 %v953
    %1247 = vmatprep.subr.bf16.mxu0 %v946
    %1248 = vmatpush2.bf16.msra.mxu0 %v945
    %1249 = vmatprep.subr.bf16.mxu0 %v938
    %1250 = vmatpush2.bf16.msra.mxu0 %v937
    %1251 = vmatprep.mubr.bf16.mxu0 %v1134
    %1252 = vmatmul.mubr.bf16.gmra.mxu0 %v1133
    %v1253 = vpop.f32.mrf.mxu0
    %v1254 = vadd.f32 %v1213, %v1253
    %v1255 = vpop.f32.mrf.mxu0
    %v1256 = vadd.f32 %v1215, %v1255
    %v1257 = vpop.f32.mrf.mxu0
    %v1258 = vpop.f32.mrf.mxu0
    %1259 = vdwg.mxu0
    %1260 = vmatprep.subr.bf16.mxu0 %v1058
    %1261 = vmatpush1.bf16.msra.mxu0 %v1057
    %1262 = vmatprep.subr.bf16.mxu0 %v1050
    %1263 = vmatpush1.bf16.msra.mxu0 %v1049
    %1264 = vmatprep.subr.bf16.mxu0 %v1042
    %1265 = vmatpush1.bf16.msra.mxu0 %v1041
    %1266 = vmatprep.subr.bf16.mxu0 %v1034
    %1267 = vmatpush1.bf16.msra.mxu0 %v1033
    %1268 = vmatprep.subr.bf16.mxu0 %v1026
    %1269 = vmatpush1.bf16.msra.mxu0 %v1025
    %1270 = vmatprep.subr.bf16.mxu0 %v1018
    %1271 = vmatpush1.bf16.msra.mxu0 %v1017
    %1272 = vmatprep.subr.bf16.mxu0 %v1010
    %1273 = vmatpush1.bf16.msra.mxu0 %v1009
    %1274 = vmatprep.subr.bf16.mxu0 %v1002
    %1275 = vmatpush1.bf16.msra.mxu0 %v1001
    %1276 = vmatprep.subr.bf16.mxu0 %v1122
    %1277 = vmatpush2.bf16.msra.mxu0 %v1121
    %1278 = vmatprep.subr.bf16.mxu0 %v1114
    %1279 = vmatpush2.bf16.msra.mxu0 %v1113
    %1280 = vmatprep.subr.bf16.mxu0 %v1106
    %1281 = vmatpush2.bf16.msra.mxu0 %v1105
    %1282 = vmatprep.subr.bf16.mxu0 %v1098
    %1283 = vmatpush2.bf16.msra.mxu0 %v1097
    %1284 = vmatprep.subr.bf16.mxu0 %v1090
    %1285 = vmatpush2.bf16.msra.mxu0 %v1089
    %1286 = vmatprep.subr.bf16.mxu0 %v1082
    %1287 = vmatpush2.bf16.msra.mxu0 %v1081
    %1288 = vmatprep.subr.bf16.mxu0 %v1074
    %1289 = vmatpush2.bf16.msra.mxu0 %v1073
    %1290 = vmatprep.subr.bf16.mxu0 %v1066
    %1291 = vmatpush2.bf16.msra.mxu0 %v1065
    %1292 = vmatprep.mubr.bf16.mxu0 %v1136
    %1293 = vmatmul.mubr.bf16.gmra.mxu0 %v1135
    %v1294 = vpop.f32.mrf.mxu0
    %v1295 = vadd.f32 %v1254, %v1294
    %v1296 = vpop.f32.mrf.mxu0
    %v1297 = vadd.f32 %v1256, %v1296
    %v1298 = vpop.f32.mrf.mxu0
    %v1299 = vpop.f32.mrf.mxu0
    %1300 = vdwg.mxu0
    %1301 = vmatprep.subr.bf16.mxu0 %v676
    %1302 = vmatpush1.bf16.msra.mxu0 %v675
    %1303 = vmatprep.subr.bf16.mxu0 %v668
    %1304 = vmatpush1.bf16.msra.mxu0 %v667
    %1305 = vmatprep.subr.bf16.mxu0 %v660
    %1306 = vmatpush1.bf16.msra.mxu0 %v659
    %1307 = vmatprep.subr.bf16.mxu0 %v652
    %1308 = vmatpush1.bf16.msra.mxu0 %v651
    %1309 = vmatprep.subr.bf16.mxu0 %v644
    %1310 = vmatpush1.bf16.msra.mxu0 %v643
    %1311 = vmatprep.subr.bf16.mxu0 %v636
    %1312 = vmatpush1.bf16.msra.mxu0 %v635
    %1313 = vmatprep.subr.bf16.mxu0 %v628
    %1314 = vmatpush1.bf16.msra.mxu0 %v627
    %1315 = vmatprep.subr.bf16.mxu0 %v620
    %1316 = vmatpush1.bf16.msra.mxu0 %v619
    %1317 = vmatprep.subr.bf16.mxu0 %v740
    %1318 = vmatpush2.bf16.msra.mxu0 %v739
    %1319 = vmatprep.subr.bf16.mxu0 %v732
    %1320 = vmatpush2.bf16.msra.mxu0 %v731
    %1321 = vmatprep.subr.bf16.mxu0 %v724
    %1322 = vmatpush2.bf16.msra.mxu0 %v723
    %1323 = vmatprep.subr.bf16.mxu0 %v716
    %1324 = vmatpush2.bf16.msra.mxu0 %v715
    %1325 = vmatprep.subr.bf16.mxu0 %v708
    %1326 = vmatpush2.bf16.msra.mxu0 %v707
    %1327 = vmatprep.subr.bf16.mxu0 %v700
    %1328 = vmatpush2.bf16.msra.mxu0 %v699
    %1329 = vmatprep.subr.bf16.mxu0 %v692
    %1330 = vmatpush2.bf16.msra.mxu0 %v691
    %1331 = vmatprep.subr.bf16.mxu0 %v684
    %1332 = vmatpush2.bf16.msra.mxu0 %v683
    %1333 = vmatprep.mubr.bf16.mxu0 %v1130
    %1334 = vmatmul.mubr.bf16.gmra.mxu0 %v1129
    %v1335 = vpop.f32.mrf.mxu0
    %v1336 = vadd.f32 0.0, %v1335
    %v1337 = vpop.f32.mrf.mxu0
    %v1338 = vadd.f32 0.0, %v1337
    %v1339 = vpop.f32.mrf.mxu0
    %v1340 = vpop.f32.mrf.mxu0
    %1341 = vdwg.mxu0
    %1342 = vmatprep.subr.bf16.mxu0 %v804
    %1343 = vmatpush1.bf16.msra.mxu0 %v803
    %1344 = vmatprep.subr.bf16.mxu0 %v796
    %1345 = vmatpush1.bf16.msra.mxu0 %v795
    %1346 = vmatprep.subr.bf16.mxu0 %v788
    %1347 = vmatpush1.bf16.msra.mxu0 %v787
    %1348 = vmatprep.subr.bf16.mxu0 %v780
    %1349 = vmatpush1.bf16.msra.mxu0 %v779
    %1350 = vmatprep.subr.bf16.mxu0 %v772
    %1351 = vmatpush1.bf16.msra.mxu0 %v771
    %1352 = vmatprep.subr.bf16.mxu0 %v764
    %1353 = vmatpush1.bf16.msra.mxu0 %v763
    %1354 = vmatprep.subr.bf16.mxu0 %v756
    %1355 = vmatpush1.bf16.msra.mxu0 %v755
    %1356 = vmatprep.subr.bf16.mxu0 %v748
    %1357 = vmatpush1.bf16.msra.mxu0 %v747
    %1358 = vmatprep.subr.bf16.mxu0 %v868
    %1359 = vmatpush2.bf16.msra.mxu0 %v867
    %1360 = vmatprep.subr.bf16.mxu0 %v860
    %1361 = vmatpush2.bf16.msra.mxu0 %v859
    %1362 = vmatprep.subr.bf16.mxu0 %v852
    %1363 = vmatpush2.bf16.msra.mxu0 %v851
    %1364 = vmatprep.subr.bf16.mxu0 %v844
    %1365 = vmatpush2.bf16.msra.mxu0 %v843
    %1366 = vmatprep.subr.bf16.mxu0 %v836
    %1367 = vmatpush2.bf16.msra.mxu0 %v835
    %1368 = vmatprep.subr.bf16.mxu0 %v828
    %1369 = vmatpush2.bf16.msra.mxu0 %v827
    %1370 = vmatprep.subr.bf16.mxu0 %v820
    %1371 = vmatpush2.bf16.msra.mxu0 %v819
    %1372 = vmatprep.subr.bf16.mxu0 %v812
    %1373 = vmatpush2.bf16.msra.mxu0 %v811
    %1374 = vmatprep.mubr.bf16.mxu0 %v1132
    %1375 = vmatmul.mubr.bf16.gmra.mxu0 %v1131
    %v1376 = vpop.f32.mrf.mxu0
    %v1377 = vadd.f32 %v1336, %v1376
    %v1378 = vpop.f32.mrf.mxu0
    %v1379 = vadd.f32 %v1338, %v1378
    %v1380 = vpop.f32.mrf.mxu0
    %v1381 = vpop.f32.mrf.mxu0
    %1382 = vdwg.mxu0
    %1383 = vmatprep.subr.bf16.mxu0 %v932
    %1384 = vmatpush1.bf16.msra.mxu0 %v931
    %1385 = vmatprep.subr.bf16.mxu0 %v924
    %1386 = vmatpush1.bf16.msra.mxu0 %v923
    %1387 = vmatprep.subr.bf16.mxu0 %v916
    %1388 = vmatpush1.bf16.msra.mxu0 %v915
    %1389 = vmatprep.subr.bf16.mxu0 %v908
    %1390 = vmatpush1.bf16.msra.mxu0 %v907
    %1391 = vmatprep.subr.bf16.mxu0 %v900
    %1392 = vmatpush1.bf16.msra.mxu0 %v899
    %1393 = vmatprep.subr.bf16.mxu0 %v892
    %1394 = vmatpush1.bf16.msra.mxu0 %v891
    %1395 = vmatprep.subr.bf16.mxu0 %v884
    %1396 = vmatpush1.bf16.msra.mxu0 %v883
    %1397 = vmatprep.subr.bf16.mxu0 %v876
    %1398 = vmatpush1.bf16.msra.mxu0 %v875
    %1399 = vmatprep.subr.bf16.mxu0 %v996
    %1400 = vmatpush2.bf16.msra.mxu0 %v995
    %1401 = vmatprep.subr.bf16.mxu0 %v988
    %1402 = vmatpush2.bf16.msra.mxu0 %v987
    %1403 = vmatprep.subr.bf16.mxu0 %v980
    %1404 = vmatpush2.bf16.msra.mxu0 %v979
    %1405 = vmatprep.subr.bf16.mxu0 %v972
    %1406 = vmatpush2.bf16.msra.mxu0 %v971
    %1407 = vmatprep.subr.bf16.mxu0 %v964
    %1408 = vmatpush2.bf16.msra.mxu0 %v963
    %1409 = vmatprep.subr.bf16.mxu0 %v956
    %1410 = vmatpush2.bf16.msra.mxu0 %v955
    %1411 = vmatprep.subr.bf16.mxu0 %v948
    %1412 = vmatpush2.bf16.msra.mxu0 %v947
    %1413 = vmatprep.subr.bf16.mxu0 %v940
    %1414 = vmatpush2.bf16.msra.mxu0 %v939
    %1415 = vmatprep.mubr.bf16.mxu0 %v1134
    %1416 = vmatmul.mubr.bf16.gmra.mxu0 %v1133
    %v1417 = vpop.f32.mrf.mxu0
    %v1418 = vadd.f32 %v1377, %v1417
    %v1419 = vpop.f32.mrf.mxu0
    %v1420 = vadd.f32 %v1379, %v1419
    %v1421 = vpop.f32.mrf.mxu0
    %v1422 = vpop.f32.mrf.mxu0
    %1423 = vdwg.mxu0
    %1424 = vmatprep.subr.bf16.mxu0 %v1060
    %1425 = vmatpush1.bf16.msra.mxu0 %v1059
    %1426 = vmatprep.subr.bf16.mxu0 %v1052
    %1427 = vmatpush1.bf16.msra.mxu0 %v1051
    %1428 = vmatprep.subr.bf16.mxu0 %v1044
    %1429 = vmatpush1.bf16.msra.mxu0 %v1043
    %1430 = vmatprep.subr.bf16.mxu0 %v1036
    %1431 = vmatpush1.bf16.msra.mxu0 %v1035
    %1432 = vmatprep.subr.bf16.mxu0 %v1028
    %1433 = vmatpush1.bf16.msra.mxu0 %v1027
    %1434 = vmatprep.subr.bf16.mxu0 %v1020
    %1435 = vmatpush1.bf16.msra.mxu0 %v1019
    %1436 = vmatprep.subr.bf16.mxu0 %v1012
    %1437 = vmatpush1.bf16.msra.mxu0 %v1011
    %1438 = vmatprep.subr.bf16.mxu0 %v1004
    %1439 = vmatpush1.bf16.msra.mxu0 %v1003
    %1440 = vmatprep.subr.bf16.mxu0 %v1124
    %1441 = vmatpush2.bf16.msra.mxu0 %v1123
    %1442 = vmatprep.subr.bf16.mxu0 %v1116
    %1443 = vmatpush2.bf16.msra.mxu0 %v1115
    %1444 = vmatprep.subr.bf16.mxu0 %v1108
    %1445 = vmatpush2.bf16.msra.mxu0 %v1107
    %1446 = vmatprep.subr.bf16.mxu0 %v1100
    %1447 = vmatpush2.bf16.msra.mxu0 %v1099
    %1448 = vmatprep.subr.bf16.mxu0 %v1092
    %1449 = vmatpush2.bf16.msra.mxu0 %v1091
    %1450 = vmatprep.subr.bf16.mxu0 %v1084
    %1451 = vmatpush2.bf16.msra.mxu0 %v1083
    %1452 = vmatprep.subr.bf16.mxu0 %v1076
    %1453 = vmatpush2.bf16.msra.mxu0 %v1075
    %1454 = vmatprep.subr.bf16.mxu0 %v1068
    %1455 = vmatpush2.bf16.msra.mxu0 %v1067
    %1456 = vmatprep.mubr.bf16.mxu0 %v1136
    %1457 = vmatmul.mubr.bf16.gmra.mxu0 %v1135
    %v1458 = vpop.f32.mrf.mxu0
    %v1459 = vadd.f32 %v1418, %v1458
    %v1460 = vpop.f32.mrf.mxu0
    %v1461 = vadd.f32 %v1420, %v1460
    %v1462 = vpop.f32.mrf.mxu0
    %v1463 = vpop.f32.mrf.mxu0
    %1464 = vdwg.mxu0
    %1465 = vmatprep.subr.bf16.mxu0 %v678
    %1466 = vmatpush1.bf16.msra.mxu0 %v677
    %1467 = vmatprep.subr.bf16.mxu0 %v670
    %1468 = vmatpush1.bf16.msra.mxu0 %v669
    %1469 = vmatprep.subr.bf16.mxu0 %v662
    %1470 = vmatpush1.bf16.msra.mxu0 %v661
    %1471 = vmatprep.subr.bf16.mxu0 %v654
    %1472 = vmatpush1.bf16.msra.mxu0 %v653
    %1473 = vmatprep.subr.bf16.mxu0 %v646
    %1474 = vmatpush1.bf16.msra.mxu0 %v645
    %1475 = vmatprep.subr.bf16.mxu0 %v638
    %1476 = vmatpush1.bf16.msra.mxu0 %v637
    %1477 = vmatprep.subr.bf16.mxu0 %v630
    %1478 = vmatpush1.bf16.msra.mxu0 %v629
    %1479 = vmatprep.subr.bf16.mxu0 %v622
    %1480 = vmatpush1.bf16.msra.mxu0 %v621
    %1481 = vmatprep.subr.bf16.mxu0 %v742
    %1482 = vmatpush2.bf16.msra.mxu0 %v741
    %1483 = vmatprep.subr.bf16.mxu0 %v734
    %1484 = vmatpush2.bf16.msra.mxu0 %v733
    %1485 = vmatprep.subr.bf16.mxu0 %v726
    %1486 = vmatpush2.bf16.msra.mxu0 %v725
    %1487 = vmatprep.subr.bf16.mxu0 %v718
    %1488 = vmatpush2.bf16.msra.mxu0 %v717
    %1489 = vmatprep.subr.bf16.mxu0 %v710
    %1490 = vmatpush2.bf16.msra.mxu0 %v709
    %1491 = vmatprep.subr.bf16.mxu0 %v702
    %1492 = vmatpush2.bf16.msra.mxu0 %v701
    %1493 = vmatprep.subr.bf16.mxu0 %v694
    %1494 = vmatpush2.bf16.msra.mxu0 %v693
    %1495 = vmatprep.subr.bf16.mxu0 %v686
    %1496 = vmatpush2.bf16.msra.mxu0 %v685
    %1497 = vmatprep.mubr.bf16.mxu0 %v1130
    %1498 = vmatmul.mubr.bf16.gmra.mxu0 %v1129
    %v1499 = vpop.f32.mrf.mxu0
    %v1500 = vadd.f32 0.0, %v1499
    %v1501 = vpop.f32.mrf.mxu0
    %v1502 = vadd.f32 0.0, %v1501
    %v1503 = vpop.f32.mrf.mxu0
    %v1504 = vpop.f32.mrf.mxu0
    %1505 = vdwg.mxu0
    %1506 = vmatprep.subr.bf16.mxu0 %v806
    %1507 = vmatpush1.bf16.msra.mxu0 %v805
    %1508 = vmatprep.subr.bf16.mxu0 %v798
    %1509 = vmatpush1.bf16.msra.mxu0 %v797
    %1510 = vmatprep.subr.bf16.mxu0 %v790
    %1511 = vmatpush1.bf16.msra.mxu0 %v789
    %1512 = vmatprep.subr.bf16.mxu0 %v782
    %1513 = vmatpush1.bf16.msra.mxu0 %v781
    %1514 = vmatprep.subr.bf16.mxu0 %v774
    %1515 = vmatpush1.bf16.msra.mxu0 %v773
    %1516 = vmatprep.subr.bf16.mxu0 %v766
    %1517 = vmatpush1.bf16.msra.mxu0 %v765
    %1518 = vmatprep.subr.bf16.mxu0 %v758
    %1519 = vmatpush1.bf16.msra.mxu0 %v757
    %1520 = vmatprep.subr.bf16.mxu0 %v750
    %1521 = vmatpush1.bf16.msra.mxu0 %v749
    %1522 = vmatprep.subr.bf16.mxu0 %v870
    %1523 = vmatpush2.bf16.msra.mxu0 %v869
    %1524 = vmatprep.subr.bf16.mxu0 %v862
    %1525 = vmatpush2.bf16.msra.mxu0 %v861
    %1526 = vmatprep.subr.bf16.mxu0 %v854
    %1527 = vmatpush2.bf16.msra.mxu0 %v853
    %1528 = vmatprep.subr.bf16.mxu0 %v846
    %1529 = vmatpush2.bf16.msra.mxu0 %v845
    %1530 = vmatprep.subr.bf16.mxu0 %v838
    %1531 = vmatpush2.bf16.msra.mxu0 %v837
    %1532 = vmatprep.subr.bf16.mxu0 %v830
    %1533 = vmatpush2.bf16.msra.mxu0 %v829
    %1534 = vmatprep.subr.bf16.mxu0 %v822
    %1535 = vmatpush2.bf16.msra.mxu0 %v821
    %1536 = vmatprep.subr.bf16.mxu0 %v814
    %1537 = vmatpush2.bf16.msra.mxu0 %v813
    %1538 = vmatprep.mubr.bf16.mxu0 %v1132
    %1539 = vmatmul.mubr.bf16.gmra.mxu0 %v1131
    %v1540 = vpop.f32.mrf.mxu0
    %v1541 = vadd.f32 %v1500, %v1540
    %v1542 = vpop.f32.mrf.mxu0
    %v1543 = vadd.f32 %v1502, %v1542
    %v1544 = vpop.f32.mrf.mxu0
    %v1545 = vpop.f32.mrf.mxu0
    %1546 = vdwg.mxu0
    %1547 = vmatprep.subr.bf16.mxu0 %v934
    %1548 = vmatpush1.bf16.msra.mxu0 %v933
    %1549 = vmatprep.subr.bf16.mxu0 %v926
    %1550 = vmatpush1.bf16.msra.mxu0 %v925
    %1551 = vmatprep.subr.bf16.mxu0 %v918
    %1552 = vmatpush1.bf16.msra.mxu0 %v917
    %1553 = vmatprep.subr.bf16.mxu0 %v910
    %1554 = vmatpush1.bf16.msra.mxu0 %v909
    %1555 = vmatprep.subr.bf16.mxu0 %v902
    %1556 = vmatpush1.bf16.msra.mxu0 %v901
    %1557 = vmatprep.subr.bf16.mxu0 %v894
    %1558 = vmatpush1.bf16.msra.mxu0 %v893
    %1559 = vmatprep.subr.bf16.mxu0 %v886
    %1560 = vmatpush1.bf16.msra.mxu0 %v885
    %1561 = vmatprep.subr.bf16.mxu0 %v878
    %1562 = vmatpush1.bf16.msra.mxu0 %v877
    %1563 = vmatprep.subr.bf16.mxu0 %v998
    %1564 = vmatpush2.bf16.msra.mxu0 %v997
    %1565 = vmatprep.subr.bf16.mxu0 %v990
    %1566 = vmatpush2.bf16.msra.mxu0 %v989
    %1567 = vmatprep.subr.bf16.mxu0 %v982
    %1568 = vmatpush2.bf16.msra.mxu0 %v981
    %1569 = vmatprep.subr.bf16.mxu0 %v974
    %1570 = vmatpush2.bf16.msra.mxu0 %v973
    %1571 = vmatprep.subr.bf16.mxu0 %v966
    %1572 = vmatpush2.bf16.msra.mxu0 %v965
    %1573 = vmatprep.subr.bf16.mxu0 %v958
    %1574 = vmatpush2.bf16.msra.mxu0 %v957
    %1575 = vmatprep.subr.bf16.mxu0 %v950
    %1576 = vmatpush2.bf16.msra.mxu0 %v949
    %1577 = vmatprep.subr.bf16.mxu0 %v942
    %1578 = vmatpush2.bf16.msra.mxu0 %v941
    %1579 = vmatprep.mubr.bf16.mxu0 %v1134
    %1580 = vmatmul.mubr.bf16.gmra.mxu0 %v1133
    %v1581 = vpop.f32.mrf.mxu0
    %v1582 = vadd.f32 %v1541, %v1581
    %v1583 = vpop.f32.mrf.mxu0
    %v1584 = vadd.f32 %v1543, %v1583
    %v1585 = vpop.f32.mrf.mxu0
    %v1586 = vpop.f32.mrf.mxu0
    %1587 = vdwg.mxu0
    %1588 = vmatprep.subr.bf16.mxu0 %v1062
    %1589 = vmatpush1.bf16.msra.mxu0 %v1061
    %1590 = vmatprep.subr.bf16.mxu0 %v1054
    %1591 = vmatpush1.bf16.msra.mxu0 %v1053
    %1592 = vmatprep.subr.bf16.mxu0 %v1046
    %1593 = vmatpush1.bf16.msra.mxu0 %v1045
    %1594 = vmatprep.subr.bf16.mxu0 %v1038
    %1595 = vmatpush1.bf16.msra.mxu0 %v1037
    %1596 = vmatprep.subr.bf16.mxu0 %v1030
    %1597 = vmatpush1.bf16.msra.mxu0 %v1029
    %1598 = vmatprep.subr.bf16.mxu0 %v1022
    %1599 = vmatpush1.bf16.msra.mxu0 %v1021
    %1600 = vmatprep.subr.bf16.mxu0 %v1014
    %1601 = vmatpush1.bf16.msra.mxu0 %v1013
    %1602 = vmatprep.subr.bf16.mxu0 %v1006
    %1603 = vmatpush1.bf16.msra.mxu0 %v1005
    %1604 = vmatprep.subr.bf16.mxu0 %v1126
    %1605 = vmatpush2.bf16.msra.mxu0 %v1125
    %1606 = vmatprep.subr.bf16.mxu0 %v1118
    %1607 = vmatpush2.bf16.msra.mxu0 %v1117
    %1608 = vmatprep.subr.bf16.mxu0 %v1110
    %1609 = vmatpush2.bf16.msra.mxu0 %v1109
    %1610 = vmatprep.subr.bf16.mxu0 %v1102
    %1611 = vmatpush2.bf16.msra.mxu0 %v1101
    %1612 = vmatprep.subr.bf16.mxu0 %v1094
    %1613 = vmatpush2.bf16.msra.mxu0 %v1093
    %1614 = vmatprep.subr.bf16.mxu0 %v1086
    %1615 = vmatpush2.bf16.msra.mxu0 %v1085
    %1616 = vmatprep.subr.bf16.mxu0 %v1078
    %1617 = vmatpush2.bf16.msra.mxu0 %v1077
    %1618 = vmatprep.subr.bf16.mxu0 %v1070
    %1619 = vmatpush2.bf16.msra.mxu0 %v1069
    %1620 = vmatprep.mubr.bf16.mxu0 %v1136
    %1621 = vmatmul.mubr.bf16.gmra.mxu0 %v1135
    %v1622 = vpop.f32.mrf.mxu0
    %v1623 = vadd.f32 %v1582, %v1622
    %v1624 = vpop.f32.mrf.mxu0
    %v1625 = vadd.f32 %v1584, %v1624
    %v1626 = vpop.f32.mrf.mxu0
    %v1627 = vpop.f32.mrf.mxu0
    %1628 = vdwg.mxu0
    %1629 = vmatprep.subr.bf16.mxu0 %v680
    %1630 = vmatpush1.bf16.msra.mxu0 %v679
    %1631 = vmatprep.subr.bf16.mxu0 %v672
    %1632 = vmatpush1.bf16.msra.mxu0 %v671
    %1633 = vmatprep.subr.bf16.mxu0 %v664
    %1634 = vmatpush1.bf16.msra.mxu0 %v663
    %1635 = vmatprep.subr.bf16.mxu0 %v656
    %1636 = vmatpush1.bf16.msra.mxu0 %v655
    %1637 = vmatprep.subr.bf16.mxu0 %v648
    %1638 = vmatpush1.bf16.msra.mxu0 %v647
    %1639 = vmatprep.subr.bf16.mxu0 %v640
    %1640 = vmatpush1.bf16.msra.mxu0 %v639
    %1641 = vmatprep.subr.bf16.mxu0 %v632
    %1642 = vmatpush1.bf16.msra.mxu0 %v631
    %1643 = vmatprep.subr.bf16.mxu0 %v624
    %1644 = vmatpush1.bf16.msra.mxu0 %v623
    %1645 = vmatprep.subr.bf16.mxu0 %v744
    %1646 = vmatpush2.bf16.msra.mxu0 %v743
    %1647 = vmatprep.subr.bf16.mxu0 %v736
    %1648 = vmatpush2.bf16.msra.mxu0 %v735
    %1649 = vmatprep.subr.bf16.mxu0 %v728
    %1650 = vmatpush2.bf16.msra.mxu0 %v727
    %1651 = vmatprep.subr.bf16.mxu0 %v720
    %1652 = vmatpush2.bf16.msra.mxu0 %v719
    %1653 = vmatprep.subr.bf16.mxu0 %v712
    %1654 = vmatpush2.bf16.msra.mxu0 %v711
    %1655 = vmatprep.subr.bf16.mxu0 %v704
    %1656 = vmatpush2.bf16.msra.mxu0 %v703
    %1657 = vmatprep.subr.bf16.mxu0 %v696
    %1658 = vmatpush2.bf16.msra.mxu0 %v695
    %1659 = vmatprep.subr.bf16.mxu0 %v688
    %1660 = vmatpush2.bf16.msra.mxu0 %v687
    %1661 = vmatprep.mubr.bf16.mxu0 %v1130
    %1662 = vmatmul.mubr.bf16.gmra.mxu0 %v1129
    %v1663 = vpop.f32.mrf.mxu0
    %v1664 = vadd.f32 0.0, %v1663
    %v1665 = vpop.f32.mrf.mxu0
    %v1666 = vadd.f32 0.0, %v1665
    %v1667 = vpop.f32.mrf.mxu0
    %v1668 = vpop.f32.mrf.mxu0
    %1669 = vdwg.mxu0
    %1670 = vmatprep.subr.bf16.mxu0 %v808
    %1671 = vmatpush1.bf16.msra.mxu0 %v807
    %1672 = vmatprep.subr.bf16.mxu0 %v800
    %1673 = vmatpush1.bf16.msra.mxu0 %v799
    %1674 = vmatprep.subr.bf16.mxu0 %v792
    %1675 = vmatpush1.bf16.msra.mxu0 %v791
    %1676 = vmatprep.subr.bf16.mxu0 %v784
    %1677 = vmatpush1.bf16.msra.mxu0 %v783
    %1678 = vmatprep.subr.bf16.mxu0 %v776
    %1679 = vmatpush1.bf16.msra.mxu0 %v775
    %1680 = vmatprep.subr.bf16.mxu0 %v768
    %1681 = vmatpush1.bf16.msra.mxu0 %v767
    %1682 = vmatprep.subr.bf16.mxu0 %v760
    %1683 = vmatpush1.bf16.msra.mxu0 %v759
    %1684 = vmatprep.subr.bf16.mxu0 %v752
    %1685 = vmatpush1.bf16.msra.mxu0 %v751
    %1686 = vmatprep.subr.bf16.mxu0 %v872
    %1687 = vmatpush2.bf16.msra.mxu0 %v871
    %1688 = vmatprep.subr.bf16.mxu0 %v864
    %1689 = vmatpush2.bf16.msra.mxu0 %v863
    %1690 = vmatprep.subr.bf16.mxu0 %v856
    %1691 = vmatpush2.bf16.msra.mxu0 %v855
    %1692 = vmatprep.subr.bf16.mxu0 %v848
    %1693 = vmatpush2.bf16.msra.mxu0 %v847
    %1694 = vmatprep.subr.bf16.mxu0 %v840
    %1695 = vmatpush2.bf16.msra.mxu0 %v839
    %1696 = vmatprep.subr.bf16.mxu0 %v832
    %1697 = vmatpush2.bf16.msra.mxu0 %v831
    %1698 = vmatprep.subr.bf16.mxu0 %v824
    %1699 = vmatpush2.bf16.msra.mxu0 %v823
    %1700 = vmatprep.subr.bf16.mxu0 %v816
    %1701 = vmatpush2.bf16.msra.mxu0 %v815
    %1702 = vmatprep.mubr.bf16.mxu0 %v1132
    %1703 = vmatmul.mubr.bf16.gmra.mxu0 %v1131
    %v1704 = vpop.f32.mrf.mxu0
    %v1705 = vadd.f32 %v1664, %v1704
    %v1706 = vpop.f32.mrf.mxu0
    %v1707 = vadd.f32 %v1666, %v1706
    %v1708 = vpop.f32.mrf.mxu0
    %v1709 = vpop.f32.mrf.mxu0
    %1710 = vdwg.mxu0
    %1711 = vmatprep.subr.bf16.mxu0 %v936
    %1712 = vmatpush1.bf16.msra.mxu0 %v935
    %1713 = vmatprep.subr.bf16.mxu0 %v928
    %1714 = vmatpush1.bf16.msra.mxu0 %v927
    %1715 = vmatprep.subr.bf16.mxu0 %v920
    %1716 = vmatpush1.bf16.msra.mxu0 %v919
    %1717 = vmatprep.subr.bf16.mxu0 %v912
    %1718 = vmatpush1.bf16.msra.mxu0 %v911
    %1719 = vmatprep.subr.bf16.mxu0 %v904
    %1720 = vmatpush1.bf16.msra.mxu0 %v903
    %1721 = vmatprep.subr.bf16.mxu0 %v896
    %1722 = vmatpush1.bf16.msra.mxu0 %v895
    %1723 = vmatprep.subr.bf16.mxu0 %v888
    %1724 = vmatpush1.bf16.msra.mxu0 %v887
    %1725 = vmatprep.subr.bf16.mxu0 %v880
    %1726 = vmatpush1.bf16.msra.mxu0 %v879
    %1727 = vmatprep.subr.bf16.mxu0 %v1000
    %1728 = vmatpush2.bf16.msra.mxu0 %v999
    %1729 = vmatprep.subr.bf16.mxu0 %v992
    %1730 = vmatpush2.bf16.msra.mxu0 %v991
    %1731 = vmatprep.subr.bf16.mxu0 %v984
    %1732 = vmatpush2.bf16.msra.mxu0 %v983
    %1733 = vmatprep.subr.bf16.mxu0 %v976
    %1734 = vmatpush2.bf16.msra.mxu0 %v975
    %1735 = vmatprep.subr.bf16.mxu0 %v968
    %1736 = vmatpush2.bf16.msra.mxu0 %v967
    %1737 = vmatprep.subr.bf16.mxu0 %v960
    %1738 = vmatpush2.bf16.msra.mxu0 %v959
    %1739 = vmatprep.subr.bf16.mxu0 %v952
    %1740 = vmatpush2.bf16.msra.mxu0 %v951
    %1741 = vmatprep.subr.bf16.mxu0 %v944
    %1742 = vmatpush2.bf16.msra.mxu0 %v943
    %1743 = vmatprep.mubr.bf16.mxu0 %v1134
    %1744 = vmatmul.mubr.bf16.gmra.mxu0 %v1133
    %v1745 = vpop.f32.mrf.mxu0
    %v1746 = vadd.f32 %v1705, %v1745
    %v1747 = vpop.f32.mrf.mxu0
    %v1748 = vadd.f32 %v1707, %v1747
    %v1749 = vpop.f32.mrf.mxu0
    %v1750 = vpop.f32.mrf.mxu0
    %1751 = vdwg.mxu0
    %1752 = vmatprep.subr.bf16.mxu0 %v1064
    %1753 = vmatpush1.bf16.msra.mxu0 %v1063
    %1754 = vmatprep.subr.bf16.mxu0 %v1056
    %1755 = vmatpush1.bf16.msra.mxu0 %v1055
    %1756 = vmatprep.subr.bf16.mxu0 %v1048
    %1757 = vmatpush1.bf16.msra.mxu0 %v1047
    %1758 = vmatprep.subr.bf16.mxu0 %v1040
    %1759 = vmatpush1.bf16.msra.mxu0 %v1039
    %1760 = vmatprep.subr.bf16.mxu0 %v1032
    %1761 = vmatpush1.bf16.msra.mxu0 %v1031
    %1762 = vmatprep.subr.bf16.mxu0 %v1024
    %1763 = vmatpush1.bf16.msra.mxu0 %v1023
    %1764 = vmatprep.subr.bf16.mxu0 %v1016
    %1765 = vmatpush1.bf16.msra.mxu0 %v1015
    %1766 = vmatprep.subr.bf16.mxu0 %v1008
    %1767 = vmatpush1.bf16.msra.mxu0 %v1007
    %1768 = vmatprep.subr.bf16.mxu0 %v1128
    %1769 = vmatpush2.bf16.msra.mxu0 %v1127
    %1770 = vmatprep.subr.bf16.mxu0 %v1120
    %1771 = vmatpush2.bf16.msra.mxu0 %v1119
    %1772 = vmatprep.subr.bf16.mxu0 %v1112
    %1773 = vmatpush2.bf16.msra.mxu0 %v1111
    %1774 = vmatprep.subr.bf16.mxu0 %v1104
    %1775 = vmatpush2.bf16.msra.mxu0 %v1103
    %1776 = vmatprep.subr.bf16.mxu0 %v1096
    %1777 = vmatpush2.bf16.msra.mxu0 %v1095
    %1778 = vmatprep.subr.bf16.mxu0 %v1088
    %1779 = vmatpush2.bf16.msra.mxu0 %v1087
    %1780 = vmatprep.subr.bf16.mxu0 %v1080
    %1781 = vmatpush2.bf16.msra.mxu0 %v1079
    %1782 = vmatprep.subr.bf16.mxu0 %v1072
    %1783 = vmatpush2.bf16.msra.mxu0 %v1071
    %1784 = vmatprep.mubr.bf16.mxu0 %v1136
    %1785 = vmatmul.mubr.bf16.gmra.mxu0 %v1135
    %v1786 = vpop.f32.mrf.mxu0
    %v1787 = vadd.f32 %v1746, %v1786
    %v1788 = vpop.f32.mrf.mxu0
    %v1789 = vadd.f32 %v1748, %v1788
    %v1790 = vpop.f32.mrf.mxu0
    %v1791 = vpop.f32.mrf.mxu0
    %1792 = vdwg.mxu0
    %v1793 = vld [vmem:[%s4] sm:$0xff]
    %v1795 = vlaneseq
    %v1796 = vshrl.u32 %v1795, 7
    %v1797 = vsub.s32 0, %v1796
    %v1798 = vrot.slane %v1793, %v1797
    %v1799 = vlaneseq
    %v1800 = vshrl.u32 %v1799, 7
    %v1801 = vsub.s32 1, %v1800
    %v1802 = vrot.slane %v1793, %v1801
    %v1803 = vlaneseq
    %v1804 = vshrl.u32 %v1803, 7
    %v1805 = vsub.s32 2, %v1804
    %v1806 = vrot.slane %v1793, %v1805
    %v1807 = vlaneseq
    %v1808 = vshrl.u32 %v1807, 7
    %v1809 = vsub.s32 3, %v1808
    %v1810 = vrot.slane %v1793, %v1809
    %v1811 = vlaneseq
    %v1812 = vshrl.u32 %v1811, 7
    %v1813 = vsub.s32 4, %v1812
    %v1814 = vrot.slane %v1793, %v1813
    %v1815 = vlaneseq
    %v1816 = vshrl.u32 %v1815, 7
    %v1817 = vsub.s32 5, %v1816
    %v1818 = vrot.slane %v1793, %v1817
    %v1819 = vlaneseq
    %v1820 = vshrl.u32 %v1819, 7
    %v1821 = vsub.s32 6, %v1820
    %v1822 = vrot.slane %v1793, %v1821
    %v1823 = vlaneseq
    %v1824 = vshrl.u32 %v1823, 7
    %v1825 = vsub.s32 7, %v1824
    %v1826 = vrot.slane %v1793, %v1825
    %v1835 = vmul.f32 %v1295, %v1798
    %v1836 = vmul.f32 %v1297, %v1802
    %v1837 = vmul.f32 %v1459, %v1806
    %v1838 = vmul.f32 %v1461, %v1810
    %v1839 = vmul.f32 %v1623, %v1814
    %v1840 = vmul.f32 %v1625, %v1818
    %v1841 = vmul.f32 %v1787, %v1822
    %v1842 = vmul.f32 %v1789, %v1826
    %v1843 = vld [vmem:[%s5] sm:$0xff]
    %v1845 = vlaneseq
    %v1846 = vshrl.u32 %v1845, 7
    %v1847 = vsub.s32 0, %v1846
    %v1848 = vrot.slane %v1843, %v1847
    %v1849 = vlaneseq
    %v1850 = vshrl.u32 %v1849, 7
    %v1851 = vsub.s32 1, %v1850
    %v1852 = vrot.slane %v1843, %v1851
    %v1853 = vlaneseq
    %v1854 = vshrl.u32 %v1853, 7
    %v1855 = vsub.s32 2, %v1854
    %v1856 = vrot.slane %v1843, %v1855
    %v1857 = vlaneseq
    %v1858 = vshrl.u32 %v1857, 7
    %v1859 = vsub.s32 3, %v1858
    %v1860 = vrot.slane %v1843, %v1859
    %v1861 = vlaneseq
    %v1862 = vshrl.u32 %v1861, 7
    %v1863 = vsub.s32 4, %v1862
    %v1864 = vrot.slane %v1843, %v1863
    %v1865 = vlaneseq
    %v1866 = vshrl.u32 %v1865, 7
    %v1867 = vsub.s32 5, %v1866
    %v1868 = vrot.slane %v1843, %v1867
    %v1869 = vlaneseq
    %v1870 = vshrl.u32 %v1869, 7
    %v1871 = vsub.s32 6, %v1870
    %v1872 = vrot.slane %v1843, %v1871
    %v1873 = vlaneseq
    %v1874 = vshrl.u32 %v1873, 7
    %v1875 = vsub.s32 7, %v1874
    %v1876 = vrot.slane %v1843, %v1875
    %v1885 = vadd.f32 %v1835, %v1848
    %v1886 = vadd.f32 %v1836, %v1852
    %v1887 = vadd.f32 %v1837, %v1856
    %v1888 = vadd.f32 %v1838, %v1860
    %v1889 = vadd.f32 %v1839, %v1864
    %v1890 = vadd.f32 %v1840, %v1868
    %v1891 = vadd.f32 %v1841, %v1872
    %v1892 = vadd.f32 %v1842, %v1876
    %v1893 = vmax.f32 %v1885, 0.0
    %v1894 = vmax.f32 %v1886, 0.0
    %v1895 = vmax.f32 %v1887, 0.0
    %v1896 = vmax.f32 %v1888, 0.0
    %v1897 = vmax.f32 %v1889, 0.0
    %v1898 = vmax.f32 %v1890, 0.0
    %v1899 = vmax.f32 %v1891, 0.0
    %v1900 = vmax.f32 %v1892, 0.0
    %v1901 = vpack.c.bf16 %v1893, %v1893
    %v1902 = vpack.c.bf16 %v1894, %v1894
    %v1903 = vpack.c.bf16 %v1895, %v1895
    %v1904 = vpack.c.bf16 %v1896, %v1896
    %v1905 = vpack.c.bf16 %v1897, %v1897
    %v1906 = vpack.c.bf16 %v1898, %v1898
    %v1907 = vpack.c.bf16 %v1899, %v1899
    %v1908 = vpack.c.bf16 %v1900, %v1900
    %v1909 = vld [vmem:[%s6] sm:$0xf]
    %v1910 = vld [vmem:[%s6 + $0x4] sm:$0xf]
    %v1911 = vld [vmem:[%s6 + $0x8] sm:$0xf]
    %v1912 = vld [vmem:[%s6 + $0xc] sm:$0xf]
    %v1913 = vld [vmem:[%s6 + $0x10] sm:$0xf]
    %v1914 = vld [vmem:[%s6 + $0x14] sm:$0xf]
    %v1915 = vld [vmem:[%s6 + $0x18] sm:$0xf]
    %v1916 = vld [vmem:[%s6 + $0x1c] sm:$0xf]
    %v1917 = vld [vmem:[%s6 + $0x20] sm:$0xf]
    %v1918 = vld [vmem:[%s6 + $0x24] sm:$0xf]
    %v1919 = vld [vmem:[%s6 + $0x28] sm:$0xf]
    %v1920 = vld [vmem:[%s6 + $0x2c] sm:$0xf]
    %v1921 = vld [vmem:[%s6 + $0x30] sm:$0xf]
    %v1922 = vld [vmem:[%s6 + $0x34] sm:$0xf]
    %v1923 = vld [vmem:[%s6 + $0x38] sm:$0xf]
    %v1924 = vld [vmem:[%s6 + $0x3c] sm:$0xf]
    %v1925 = vld [vmem:[%s6 + $0x40] sm:$0xf]
    %v1926 = vld [vmem:[%s6 + $0x44] sm:$0xf]
    %v1927 = vld [vmem:[%s6 + $0x48] sm:$0xf]
    %v1928 = vld [vmem:[%s6 + $0x4c] sm:$0xf]
    %v1929 = vld [vmem:[%s6 + $0x50] sm:$0xf]
    %v1930 = vld [vmem:[%s6 + $0x54] sm:$0xf]
    %v1931 = vld [vmem:[%s6 + $0x58] sm:$0xf]
    %v1932 = vld [vmem:[%s6 + $0x5c] sm:$0xf]
    %v1933 = vld [vmem:[%s6 + $0x60] sm:$0xf]
    %v1934 = vld [vmem:[%s6 + $0x64] sm:$0xf]
    %v1935 = vld [vmem:[%s6 + $0x68] sm:$0xf]
    %v1936 = vld [vmem:[%s6 + $0x6c] sm:$0xf]
    %v1937 = vld [vmem:[%s6 + $0x70] sm:$0xf]
    %v1938 = vld [vmem:[%s6 + $0x74] sm:$0xf]
    %v1939 = vld [vmem:[%s6 + $0x78] sm:$0xf]
    %v1940 = vld [vmem:[%s6 + $0x7c] sm:$0xf]
    %v1941 = vld [vmem:[%s6 + $0x80] sm:$0xf]
    %v1942 = vld [vmem:[%s6 + $0x84] sm:$0xf]
    %v1943 = vld [vmem:[%s6 + $0x88] sm:$0xf]
    %v1944 = vld [vmem:[%s6 + $0x8c] sm:$0xf]
    %v1945 = vld [vmem:[%s6 + $0x90] sm:$0xf]
    %v1946 = vld [vmem:[%s6 + $0x94] sm:$0xf]
    %v1947 = vld [vmem:[%s6 + $0x98] sm:$0xf]
    %v1948 = vld [vmem:[%s6 + $0x9c] sm:$0xf]
    %v1949 = vld [vmem:[%s6 + $0xa0] sm:$0xf]
    %v1950 = vld [vmem:[%s6 + $0xa4] sm:$0xf]
    %v1951 = vld [vmem:[%s6 + $0xa8] sm:$0xf]
    %v1952 = vld [vmem:[%s6 + $0xac] sm:$0xf]
    %v1953 = vld [vmem:[%s6 + $0xb0] sm:$0xf]
    %v1954 = vld [vmem:[%s6 + $0xb4] sm:$0xf]
    %v1955 = vld [vmem:[%s6 + $0xb8] sm:$0xf]
    %v1956 = vld [vmem:[%s6 + $0xbc] sm:$0xf]
    %v1957 = vld [vmem:[%s6 + $0xc0] sm:$0xf]
    %v1958 = vld [vmem:[%s6 + $0xc4] sm:$0xf]
    %v1959 = vld [vmem:[%s6 + $0xc8] sm:$0xf]
    %v1960 = vld [vmem:[%s6 + $0xcc] sm:$0xf]
    %v1961 = vld [vmem:[%s6 + $0xd0] sm:$0xf]
    %v1962 = vld [vmem:[%s6 + $0xd4] sm:$0xf]
    %v1963 = vld [vmem:[%s6 + $0xd8] sm:$0xf]
    %v1964 = vld [vmem:[%s6 + $0xdc] sm:$0xf]
    %v1965 = vld [vmem:[%s6 + $0xe0] sm:$0xf]
    %v1966 = vld [vmem:[%s6 + $0xe4] sm:$0xf]
    %v1967 = vld [vmem:[%s6 + $0xe8] sm:$0xf]
    %v1968 = vld [vmem:[%s6 + $0xec] sm:$0xf]
    %v1969 = vld [vmem:[%s6 + $0xf0] sm:$0xf]
    %v1970 = vld [vmem:[%s6 + $0xf4] sm:$0xf]
    %v1971 = vld [vmem:[%s6 + $0xf8] sm:$0xf]
    %v1972 = vld [vmem:[%s6 + $0xfc] sm:$0xf]
    %v1973 = vld [vmem:[%s6 + $0x100] sm:$0xf]
    %v1974 = vld [vmem:[%s6 + $0x104] sm:$0xf]
    %v1975 = vld [vmem:[%s6 + $0x108] sm:$0xf]
    %v1976 = vld [vmem:[%s6 + $0x10c] sm:$0xf]
    %v1977 = vld [vmem:[%s6 + $0x110] sm:$0xf]
    %v1978 = vld [vmem:[%s6 + $0x114] sm:$0xf]
    %v1979 = vld [vmem:[%s6 + $0x118] sm:$0xf]
    %v1980 = vld [vmem:[%s6 + $0x11c] sm:$0xf]
    %v1981 = vld [vmem:[%s6 + $0x120] sm:$0xf]
    %v1982 = vld [vmem:[%s6 + $0x124] sm:$0xf]
    %v1983 = vld [vmem:[%s6 + $0x128] sm:$0xf]
    %v1984 = vld [vmem:[%s6 + $0x12c] sm:$0xf]
    %v1985 = vld [vmem:[%s6 + $0x130] sm:$0xf]
    %v1986 = vld [vmem:[%s6 + $0x134] sm:$0xf]
    %v1987 = vld [vmem:[%s6 + $0x138] sm:$0xf]
    %v1988 = vld [vmem:[%s6 + $0x13c] sm:$0xf]
    %v1989 = vld [vmem:[%s6 + $0x140] sm:$0xf]
    %v1990 = vld [vmem:[%s6 + $0x144] sm:$0xf]
    %v1991 = vld [vmem:[%s6 + $0x148] sm:$0xf]
    %v1992 = vld [vmem:[%s6 + $0x14c] sm:$0xf]
    %v1993 = vld [vmem:[%s6 + $0x150] sm:$0xf]
    %v1994 = vld [vmem:[%s6 + $0x154] sm:$0xf]
    %v1995 = vld [vmem:[%s6 + $0x158] sm:$0xf]
    %v1996 = vld [vmem:[%s6 + $0x15c] sm:$0xf]
    %v1997 = vld [vmem:[%s6 + $0x160] sm:$0xf]
    %v1998 = vld [vmem:[%s6 + $0x164] sm:$0xf]
    %v1999 = vld [vmem:[%s6 + $0x168] sm:$0xf]
    %v2000 = vld [vmem:[%s6 + $0x16c] sm:$0xf]
    %v2001 = vld [vmem:[%s6 + $0x170] sm:$0xf]
    %v2002 = vld [vmem:[%s6 + $0x174] sm:$0xf]
    %v2003 = vld [vmem:[%s6 + $0x178] sm:$0xf]
    %v2004 = vld [vmem:[%s6 + $0x17c] sm:$0xf]
    %v2005 = vld [vmem:[%s6 + $0x180] sm:$0xf]
    %v2006 = vld [vmem:[%s6 + $0x184] sm:$0xf]
    %v2007 = vld [vmem:[%s6 + $0x188] sm:$0xf]
    %v2008 = vld [vmem:[%s6 + $0x18c] sm:$0xf]
    %v2009 = vld [vmem:[%s6 + $0x190] sm:$0xf]
    %v2010 = vld [vmem:[%s6 + $0x194] sm:$0xf]
    %v2011 = vld [vmem:[%s6 + $0x198] sm:$0xf]
    %v2012 = vld [vmem:[%s6 + $0x19c] sm:$0xf]
    %v2013 = vld [vmem:[%s6 + $0x1a0] sm:$0xf]
    %v2014 = vld [vmem:[%s6 + $0x1a4] sm:$0xf]
    %v2015 = vld [vmem:[%s6 + $0x1a8] sm:$0xf]
    %v2016 = vld [vmem:[%s6 + $0x1ac] sm:$0xf]
    %v2017 = vld [vmem:[%s6 + $0x1b0] sm:$0xf]
    %v2018 = vld [vmem:[%s6 + $0x1b4] sm:$0xf]
    %v2019 = vld [vmem:[%s6 + $0x1b8] sm:$0xf]
    %v2020 = vld [vmem:[%s6 + $0x1bc] sm:$0xf]
    %v2021 = vld [vmem:[%s6 + $0x1c0] sm:$0xf]
    %v2022 = vld [vmem:[%s6 + $0x1c4] sm:$0xf]
    %v2023 = vld [vmem:[%s6 + $0x1c8] sm:$0xf]
    %v2024 = vld [vmem:[%s6 + $0x1cc] sm:$0xf]
    %v2025 = vld [vmem:[%s6 + $0x1d0] sm:$0xf]
    %v2026 = vld [vmem:[%s6 + $0x1d4] sm:$0xf]
    %v2027 = vld [vmem:[%s6 + $0x1d8] sm:$0xf]
    %v2028 = vld [vmem:[%s6 + $0x1dc] sm:$0xf]
    %v2029 = vld [vmem:[%s6 + $0x1e0] sm:$0xf]
    %v2030 = vld [vmem:[%s6 + $0x1e4] sm:$0xf]
    %v2031 = vld [vmem:[%s6 + $0x1e8] sm:$0xf]
    %v2032 = vld [vmem:[%s6 + $0x1ec] sm:$0xf]
    %v2033 = vld [vmem:[%s6 + $0x1f0] sm:$0xf]
    %v2034 = vld [vmem:[%s6 + $0x1f4] sm:$0xf]
    %v2035 = vld [vmem:[%s6 + $0x1f8] sm:$0xf]
    %v2036 = vld [vmem:[%s6 + $0x1fc] sm:$0xf]
    %v2037 = vld [vmem:[%s7] sm:$0x1]
    %v2039 = vlaneseq
    %v2040 = vshrl.u32 %v2039, 7
    %v2041 = vsub.s32 0, %v2040
    %v2042 = vrot.slane %v2037, %v2041
    %v2172 = vunpack.c.l.b16 %v1909
    %v2173 = vunpack.c.l.b16 %v1910
    %v2174 = vunpack.c.l.b16 %v1911
    %v2175 = vunpack.c.l.b16 %v1912
    %v2176 = vunpack.c.l.b16 %v1913
    %v2177 = vunpack.c.l.b16 %v1914
    %v2178 = vunpack.c.l.b16 %v1915
    %v2179 = vunpack.c.l.b16 %v1916
    %v2180 = vunpack.c.l.b16 %v1917
    %v2181 = vunpack.c.l.b16 %v1918
    %v2182 = vunpack.c.l.b16 %v1919
    %v2183 = vunpack.c.l.b16 %v1920
    %v2184 = vunpack.c.l.b16 %v1921
    %v2185 = vunpack.c.l.b16 %v1922
    %v2186 = vunpack.c.l.b16 %v1923
    %v2187 = vunpack.c.l.b16 %v1924
    %v2188 = vunpack.c.l.b16 %v1925
    %v2189 = vunpack.c.l.b16 %v1926
    %v2190 = vunpack.c.l.b16 %v1927
    %v2191 = vunpack.c.l.b16 %v1928
    %v2192 = vunpack.c.l.b16 %v1929
    %v2193 = vunpack.c.l.b16 %v1930
    %v2194 = vunpack.c.l.b16 %v1931
    %v2195 = vunpack.c.l.b16 %v1932
    %v2196 = vunpack.c.l.b16 %v1933
    %v2197 = vunpack.c.l.b16 %v1934
    %v2198 = vunpack.c.l.b16 %v1935
    %v2199 = vunpack.c.l.b16 %v1936
    %v2200 = vunpack.c.l.b16 %v1937
    %v2201 = vunpack.c.l.b16 %v1938
    %v2202 = vunpack.c.l.b16 %v1939
    %v2203 = vunpack.c.l.b16 %v1940
    %v2204 = vunpack.c.l.b16 %v1941
    %v2205 = vunpack.c.l.b16 %v1942
    %v2206 = vunpack.c.l.b16 %v1943
    %v2207 = vunpack.c.l.b16 %v1944
    %v2208 = vunpack.c.l.b16 %v1945
    %v2209 = vunpack.c.l.b16 %v1946
    %v2210 = vunpack.c.l.b16 %v1947
    %v2211 = vunpack.c.l.b16 %v1948
    %v2212 = vunpack.c.l.b16 %v1949
    %v2213 = vunpack.c.l.b16 %v1950
    %v2214 = vunpack.c.l.b16 %v1951
    %v2215 = vunpack.c.l.b16 %v1952
    %v2216 = vunpack.c.l.b16 %v1953
    %v2217 = vunpack.c.l.b16 %v1954
    %v2218 = vunpack.c.l.b16 %v1955
    %v2219 = vunpack.c.l.b16 %v1956
    %v2220 = vunpack.c.l.b16 %v1957
    %v2221 = vunpack.c.l.b16 %v1958
    %v2222 = vunpack.c.l.b16 %v1959
    %v2223 = vunpack.c.l.b16 %v1960
    %v2224 = vunpack.c.l.b16 %v1961
    %v2225 = vunpack.c.l.b16 %v1962
    %v2226 = vunpack.c.l.b16 %v1963
    %v2227 = vunpack.c.l.b16 %v1964
    %v2228 = vunpack.c.l.b16 %v1965
    %v2229 = vunpack.c.l.b16 %v1966
    %v2230 = vunpack.c.l.b16 %v1967
    %v2231 = vunpack.c.l.b16 %v1968
    %v2232 = vunpack.c.l.b16 %v1969
    %v2233 = vunpack.c.l.b16 %v1970
    %v2234 = vunpack.c.l.b16 %v1971
    %v2235 = vunpack.c.l.b16 %v1972
    %v2236 = vunpack.c.l.b16 %v1973
    %v2237 = vunpack.c.l.b16 %v1974
    %v2238 = vunpack.c.l.b16 %v1975
    %v2239 = vunpack.c.l.b16 %v1976
    %v2240 = vunpack.c.l.b16 %v1977
    %v2241 = vunpack.c.l.b16 %v1978
    %v2242 = vunpack.c.l.b16 %v1979
    %v2243 = vunpack.c.l.b16 %v1980
    %v2244 = vunpack.c.l.b16 %v1981
    %v2245 = vunpack.c.l.b16 %v1982
    %v2246 = vunpack.c.l.b16 %v1983
    %v2247 = vunpack.c.l.b16 %v1984
    %v2248 = vunpack.c.l.b16 %v1985
    %v2249 = vunpack.c.l.b16 %v1986
    %v2250 = vunpack.c.l.b16 %v1987
    %v2251 = vunpack.c.l.b16 %v1988
    %v2252 = vunpack.c.l.b16 %v1989
    %v2253 = vunpack.c.l.b16 %v1990
    %v2254 = vunpack.c.l.b16 %v1991
    %v2255 = vunpack.c.l.b16 %v1992
    %v2256 = vunpack.c.l.b16 %v1993
    %v2257 = vunpack.c.l.b16 %v1994
    %v2258 = vunpack.c.l.b16 %v1995
    %v2259 = vunpack.c.l.b16 %v1996
    %v2260 = vunpack.c.l.b16 %v1997
    %v2261 = vunpack.c.l.b16 %v1998
    %v2262 = vunpack.c.l.b16 %v1999
    %v2263 = vunpack.c.l.b16 %v2000
    %v2264 = vunpack.c.l.b16 %v2001
    %v2265 = vunpack.c.l.b16 %v2002
    %v2266 = vunpack.c.l.b16 %v2003
    %v2267 = vunpack.c.l.b16 %v2004
    %v2268 = vunpack.c.l.b16 %v2005
    %v2269 = vunpack.c.l.b16 %v2006
    %v2270 = vunpack.c.l.b16 %v2007
    %v2271 = vunpack.c.l.b16 %v2008
    %v2272 = vunpack.c.l.b16 %v2009
    %v2273 = vunpack.c.l.b16 %v2010
    %v2274 = vunpack.c.l.b16 %v2011
    %v2275 = vunpack.c.l.b16 %v2012
    %v2276 = vunpack.c.l.b16 %v2013
    %v2277 = vunpack.c.l.b16 %v2014
    %v2278 = vunpack.c.l.b16 %v2015
    %v2279 = vunpack.c.l.b16 %v2016
    %v2280 = vunpack.c.l.b16 %v2017
    %v2281 = vunpack.c.l.b16 %v2018
    %v2282 = vunpack.c.l.b16 %v2019
    %v2283 = vunpack.c.l.b16 %v2020
    %v2284 = vunpack.c.l.b16 %v2021
    %v2285 = vunpack.c.l.b16 %v2022
    %v2286 = vunpack.c.l.b16 %v2023
    %v2287 = vunpack.c.l.b16 %v2024
    %v2288 = vunpack.c.l.b16 %v2025
    %v2289 = vunpack.c.l.b16 %v2026
    %v2290 = vunpack.c.l.b16 %v2027
    %v2291 = vunpack.c.l.b16 %v2028
    %v2292 = vunpack.c.l.b16 %v2029
    %v2293 = vunpack.c.l.b16 %v2030
    %v2294 = vunpack.c.l.b16 %v2031
    %v2295 = vunpack.c.l.b16 %v2032
    %v2296 = vunpack.c.l.b16 %v2033
    %v2297 = vunpack.c.l.b16 %v2034
    %v2298 = vunpack.c.l.b16 %v2035
    %v2299 = vunpack.c.l.b16 %v2036
    %v2300 = vpack.c.b16 %v2173, %v2172
    %v2301 = vpack.c.b16 %v2175, %v2174
    %v2302 = vpack.c.b16 %v2177, %v2176
    %v2303 = vpack.c.b16 %v2179, %v2178
    %v2304 = vpack.c.b16 %v2181, %v2180
    %v2305 = vpack.c.b16 %v2183, %v2182
    %v2306 = vpack.c.b16 %v2185, %v2184
    %v2307 = vpack.c.b16 %v2187, %v2186
    %v2308 = vpack.c.b16 %v2189, %v2188
    %v2309 = vpack.c.b16 %v2191, %v2190
    %v2310 = vpack.c.b16 %v2193, %v2192
    %v2311 = vpack.c.b16 %v2195, %v2194
    %v2312 = vpack.c.b16 %v2197, %v2196
    %v2313 = vpack.c.b16 %v2199, %v2198
    %v2314 = vpack.c.b16 %v2201, %v2200
    %v2315 = vpack.c.b16 %v2203, %v2202
    %v2316 = vpack.c.b16 %v2205, %v2204
    %v2317 = vpack.c.b16 %v2207, %v2206
    %v2318 = vpack.c.b16 %v2209, %v2208
    %v2319 = vpack.c.b16 %v2211, %v2210
    %v2320 = vpack.c.b16 %v2213, %v2212
    %v2321 = vpack.c.b16 %v2215, %v2214
    %v2322 = vpack.c.b16 %v2217, %v2216
    %v2323 = vpack.c.b16 %v2219, %v2218
    %v2324 = vpack.c.b16 %v2221, %v2220
    %v2325 = vpack.c.b16 %v2223, %v2222
    %v2326 = vpack.c.b16 %v2225, %v2224
    %v2327 = vpack.c.b16 %v2227, %v2226
    %v2328 = vpack.c.b16 %v2229, %v2228
    %v2329 = vpack.c.b16 %v2231, %v2230
    %v2330 = vpack.c.b16 %v2233, %v2232
    %v2331 = vpack.c.b16 %v2235, %v2234
    %v2332 = vpack.c.b16 %v2237, %v2236
    %v2333 = vpack.c.b16 %v2239, %v2238
    %v2334 = vpack.c.b16 %v2241, %v2240
    %v2335 = vpack.c.b16 %v2243, %v2242
    %v2336 = vpack.c.b16 %v2245, %v2244
    %v2337 = vpack.c.b16 %v2247, %v2246
    %v2338 = vpack.c.b16 %v2249, %v2248
    %v2339 = vpack.c.b16 %v2251, %v2250
    %v2340 = vpack.c.b16 %v2253, %v2252
    %v2341 = vpack.c.b16 %v2255, %v2254
    %v2342 = vpack.c.b16 %v2257, %v2256
    %v2343 = vpack.c.b16 %v2259, %v2258
    %v2344 = vpack.c.b16 %v2261, %v2260
    %v2345 = vpack.c.b16 %v2263, %v2262
    %v2346 = vpack.c.b16 %v2265, %v2264
    %v2347 = vpack.c.b16 %v2267, %v2266
    %v2348 = vpack.c.b16 %v2269, %v2268
    %v2349 = vpack.c.b16 %v2271, %v2270
    %v2350 = vpack.c.b16 %v2273, %v2272
    %v2351 = vpack.c.b16 %v2275, %v2274
    %v2352 = vpack.c.b16 %v2277, %v2276
    %v2353 = vpack.c.b16 %v2279, %v2278
    %v2354 = vpack.c.b16 %v2281, %v2280
    %v2355 = vpack.c.b16 %v2283, %v2282
    %v2356 = vpack.c.b16 %v2285, %v2284
    %v2357 = vpack.c.b16 %v2287, %v2286
    %v2358 = vpack.c.b16 %v2289, %v2288
    %v2359 = vpack.c.b16 %v2291, %v2290
    %v2360 = vpack.c.b16 %v2293, %v2292
    %v2361 = vpack.c.b16 %v2295, %v2294
    %v2362 = vpack.c.b16 %v2297, %v2296
    %v2363 = vpack.c.b16 %v2299, %v2298
    %2428 = vmatprep.subr.bf16.mxu0 0
    %2429 = vmatpush1.bf16.msra.mxu0 %v2307
    %2430 = vmatprep.subr.bf16.mxu0 0
    %2431 = vmatpush1.bf16.msra.mxu0 %v2306
    %2432 = vmatprep.subr.bf16.mxu0 0
    %2433 = vmatpush1.bf16.msra.mxu0 %v2305
    %2434 = vmatprep.subr.bf16.mxu0 0
    %2435 = vmatpush1.bf16.msra.mxu0 %v2304
    %2436 = vmatprep.subr.bf16.mxu0 0
    %2437 = vmatpush1.bf16.msra.mxu0 %v2303
    %2438 = vmatprep.subr.bf16.mxu0 0
    %2439 = vmatpush1.bf16.msra.mxu0 %v2302
    %2440 = vmatprep.subr.bf16.mxu0 0
    %2441 = vmatpush1.bf16.msra.mxu0 %v2301
    %2442 = vmatprep.subr.bf16.mxu0 0
    %2443 = vmatpush1.bf16.msra.mxu0 %v2300
    %2444 = vmatprep.subr.bf16.mxu0 0
    %2445 = vmatpush2.bf16.msra.mxu0 %v2315
    %2446 = vmatprep.subr.bf16.mxu0 0
    %2447 = vmatpush2.bf16.msra.mxu0 %v2314
    %2448 = vmatprep.subr.bf16.mxu0 0
    %2449 = vmatpush2.bf16.msra.mxu0 %v2313
    %2450 = vmatprep.subr.bf16.mxu0 0
    %2451 = vmatpush2.bf16.msra.mxu0 %v2312
    %2452 = vmatprep.subr.bf16.mxu0 0
    %2453 = vmatpush2.bf16.msra.mxu0 %v2311
    %2454 = vmatprep.subr.bf16.mxu0 0
    %2455 = vmatpush2.bf16.msra.mxu0 %v2310
    %2456 = vmatprep.subr.bf16.mxu0 0
    %2457 = vmatpush2.bf16.msra.mxu0 %v2309
    %2458 = vmatprep.subr.bf16.mxu0 0
    %2459 = vmatpush2.bf16.msra.mxu0 %v2308
    %2460 = vmatprep.mubr.bf16.mxu0 %v1902
    %2461 = vmatmul.mubr.bf16.gmra.mxu0 %v1901
    %v2462 = vpop.f32.mrf.mxu0
    %v2463 = vadd.f32 %v2042, %v2462
    %v2464 = vpop.f32.mrf.mxu0
    %v2465 = vpop.f32.mrf.mxu0
    %v2466 = vpop.f32.mrf.mxu0
    %2467 = vdwg.mxu0
    %2468 = vmatprep.subr.bf16.mxu0 0
    %2469 = vmatpush1.bf16.msra.mxu0 %v2323
    %2470 = vmatprep.subr.bf16.mxu0 0
    %2471 = vmatpush1.bf16.msra.mxu0 %v2322
    %2472 = vmatprep.subr.bf16.mxu0 0
    %2473 = vmatpush1.bf16.msra.mxu0 %v2321
    %2474 = vmatprep.subr.bf16.mxu0 0
    %2475 = vmatpush1.bf16.msra.mxu0 %v2320
    %2476 = vmatprep.subr.bf16.mxu0 0
    %2477 = vmatpush1.bf16.msra.mxu0 %v2319
    %2478 = vmatprep.subr.bf16.mxu0 0
    %2479 = vmatpush1.bf16.msra.mxu0 %v2318
    %2480 = vmatprep.subr.bf16.mxu0 0
    %2481 = vmatpush1.bf16.msra.mxu0 %v2317
    %2482 = vmatprep.subr.bf16.mxu0 0
    %2483 = vmatpush1.bf16.msra.mxu0 %v2316
    %2484 = vmatprep.subr.bf16.mxu0 0
    %2485 = vmatpush2.bf16.msra.mxu0 %v2331
    %2486 = vmatprep.subr.bf16.mxu0 0
    %2487 = vmatpush2.bf16.msra.mxu0 %v2330
    %2488 = vmatprep.subr.bf16.mxu0 0
    %2489 = vmatpush2.bf16.msra.mxu0 %v2329
    %2490 = vmatprep.subr.bf16.mxu0 0
    %2491 = vmatpush2.bf16.msra.mxu0 %v2328
    %2492 = vmatprep.subr.bf16.mxu0 0
    %2493 = vmatpush2.bf16.msra.mxu0 %v2327
    %2494 = vmatprep.subr.bf16.mxu0 0
    %2495 = vmatpush2.bf16.msra.mxu0 %v2326
    %2496 = vmatprep.subr.bf16.mxu0 0
    %2497 = vmatpush2.bf16.msra.mxu0 %v2325
    %2498 = vmatprep.subr.bf16.mxu0 0
    %2499 = vmatpush2.bf16.msra.mxu0 %v2324
    %2500 = vmatprep.mubr.bf16.mxu0 %v1904
    %2501 = vmatmul.mubr.bf16.gmra.mxu0 %v1903
    %v2502 = vpop.f32.mrf.mxu0
    %v2503 = vadd.f32 %v2463, %v2502
    %v2504 = vpop.f32.mrf.mxu0
    %v2505 = vpop.f32.mrf.mxu0
    %v2506 = vpop.f32.mrf.mxu0
    %2507 = vdwg.mxu0
    %2508 = vmatprep.subr.bf16.mxu0 0
    %2509 = vmatpush1.bf16.msra.mxu0 %v2339
    %2510 = vmatprep.subr.bf16.mxu0 0
    %2511 = vmatpush1.bf16.msra.mxu0 %v2338
    %2512 = vmatprep.subr.bf16.mxu0 0
    %2513 = vmatpush1.bf16.msra.mxu0 %v2337
    %2514 = vmatprep.subr.bf16.mxu0 0
    %2515 = vmatpush1.bf16.msra.mxu0 %v2336
    %2516 = vmatprep.subr.bf16.mxu0 0
    %2517 = vmatpush1.bf16.msra.mxu0 %v2335
    %2518 = vmatprep.subr.bf16.mxu0 0
    %2519 = vmatpush1.bf16.msra.mxu0 %v2334
    %2520 = vmatprep.subr.bf16.mxu0 0
    %2521 = vmatpush1.bf16.msra.mxu0 %v2333
    %2522 = vmatprep.subr.bf16.mxu0 0
    %2523 = vmatpush1.bf16.msra.mxu0 %v2332
    %2524 = vmatprep.subr.bf16.mxu0 0
    %2525 = vmatpush2.bf16.msra.mxu0 %v2347
    %2526 = vmatprep.subr.bf16.mxu0 0
    %2527 = vmatpush2.bf16.msra.mxu0 %v2346
    %2528 = vmatprep.subr.bf16.mxu0 0
    %2529 = vmatpush2.bf16.msra.mxu0 %v2345
    %2530 = vmatprep.subr.bf16.mxu0 0
    %2531 = vmatpush2.bf16.msra.mxu0 %v2344
    %2532 = vmatprep.subr.bf16.mxu0 0
    %2533 = vmatpush2.bf16.msra.mxu0 %v2343
    %2534 = vmatprep.subr.bf16.mxu0 0
    %2535 = vmatpush2.bf16.msra.mxu0 %v2342
    %2536 = vmatprep.subr.bf16.mxu0 0
    %2537 = vmatpush2.bf16.msra.mxu0 %v2341
    %2538 = vmatprep.subr.bf16.mxu0 0
    %2539 = vmatpush2.bf16.msra.mxu0 %v2340
    %2540 = vmatprep.mubr.bf16.mxu0 %v1906
    %2541 = vmatmul.mubr.bf16.gmra.mxu0 %v1905
    %v2542 = vpop.f32.mrf.mxu0
    %v2543 = vadd.f32 %v2503, %v2542
    %v2544 = vpop.f32.mrf.mxu0
    %v2545 = vpop.f32.mrf.mxu0
    %v2546 = vpop.f32.mrf.mxu0
    %2547 = vdwg.mxu0
    %2548 = vmatprep.subr.bf16.mxu0 0
    %2549 = vmatpush1.bf16.msra.mxu0 %v2355
    %2550 = vmatprep.subr.bf16.mxu0 0
    %2551 = vmatpush1.bf16.msra.mxu0 %v2354
    %2552 = vmatprep.subr.bf16.mxu0 0
    %2553 = vmatpush1.bf16.msra.mxu0 %v2353
    %2554 = vmatprep.subr.bf16.mxu0 0
    %2555 = vmatpush1.bf16.msra.mxu0 %v2352
    %2556 = vmatprep.subr.bf16.mxu0 0
    %2557 = vmatpush1.bf16.msra.mxu0 %v2351
    %2558 = vmatprep.subr.bf16.mxu0 0
    %2559 = vmatpush1.bf16.msra.mxu0 %v2350
    %2560 = vmatprep.subr.bf16.mxu0 0
    %2561 = vmatpush1.bf16.msra.mxu0 %v2349
    %2562 = vmatprep.subr.bf16.mxu0 0
    %2563 = vmatpush1.bf16.msra.mxu0 %v2348
    %2564 = vmatprep.subr.bf16.mxu0 0
    %2565 = vmatpush2.bf16.msra.mxu0 %v2363
    %2566 = vmatprep.subr.bf16.mxu0 0
    %2567 = vmatpush2.bf16.msra.mxu0 %v2362
    %2568 = vmatprep.subr.bf16.mxu0 0
    %2569 = vmatpush2.bf16.msra.mxu0 %v2361
    %2570 = vmatprep.subr.bf16.mxu0 0
    %2571 = vmatpush2.bf16.msra.mxu0 %v2360
    %2572 = vmatprep.subr.bf16.mxu0 0
    %2573 = vmatpush2.bf16.msra.mxu0 %v2359
    %2574 = vmatprep.subr.bf16.mxu0 0
    %2575 = vmatpush2.bf16.msra.mxu0 %v2358
    %2576 = vmatprep.subr.bf16.mxu0 0
    %2577 = vmatpush2.bf16.msra.mxu0 %v2357
    %2578 = vmatprep.subr.bf16.mxu0 0
    %2579 = vmatpush2.bf16.msra.mxu0 %v2356
    %2580 = vmatprep.mubr.bf16.mxu0 %v1908
    %2581 = vmatmul.mubr.bf16.gmra.mxu0 %v1907
    %v2582 = vpop.f32.mrf.mxu0
    %v2583 = vadd.f32 %v2543, %v2582
    %v2584 = vpop.f32.mrf.mxu0
    %v2585 = vpop.f32.mrf.mxu0
    %v2586 = vpop.f32.mrf.mxu0
    %2587 = vdwg.mxu0
    %vm2588 = vcmask 130048
    %2589 = vst.msk [vmem:[#allocation5] sm:$0xff] %vm2588, %v2583
    // Predicated region
    $region38: #{tpu_custom_call.1} parent=1 // pred_check
      _
    $region39: #{tpu_custom_call.1} parent=1 // pred_check_branch
      %2591 = sbr.rel (0) target = $region41
    $region40: #{tpu_custom_call.1} parent=1 // pred_region
      %s2593 = ssub.s32 128, 128
      %2594 = vsyncadd [#allocation4], %s2593
      %s2596 = sshll.u32 [#allocation5], 4
      %s2597 = int_to_ptr.vmem [resolvable:$true] %s2596
      %2599 = dma.vmem_to_hbm [thread:$0]  %s2597, 128, %s8, [#allocation4]
    $region41: #{tpu_custom_call.1} parent=1 // pred_fallthru
      _
    // Predicated region
    $region42: #{tpu_custom_call.1} parent=1 // pred_check
      _
    $region43: #{tpu_custom_call.1} parent=1 // pred_check_branch
      %2601 = sbr.rel (0) target = $region45
    $region44: #{tpu_custom_call.1} parent=1 // pred_region
      %2602 = dma.done [#allocation4], 128
    $region45: #{tpu_custom_call.1} parent=1 // pred_fallthru
      _
    %2603 = vsyncpa [#allocation3], 1
    %2604 = vsyncpa [#allocation4], 1

</llo_original>
